<compile_context>
chip_gen: v6e
topology: v6e:2x2x1
jax: 0.10.0
libtpu: 0.0.40
codegen_flags: <defaults>
</compile_context>

<pallas_src>
import functools

import jax
import jax.numpy as jnp
from jax.experimental import pallas as pl
from jax.experimental.pallas import tpu as pltpu


# ----------------------------------------------------------------------------
# Wrapper-side layout glue (runs once in XLA, outside the kernels).
# ----------------------------------------------------------------------------
def _fold_input(x_nchw, ph, pw):
    """NCHW -> zero-padded NHWC with Cin folded into the lane axis."""
    n, cin, h, w = x_nchw.shape
    x = jnp.transpose(x_nchw, (0, 2, 3, 1)).astype(jnp.float32)
    xp = jnp.pad(x, ((0, 0), (ph, ph), (pw, pw), (0, 0)))
    return xp.reshape(n, h + 2 * ph, (w + 2 * pw) * cin)


def _banded_weight(wq, w, pw):
    """(Cout, Cin, kh, kw) -> (kh, (W+2pw)*Cin, W*Cout) block-banded matrix.

    W_big[dy, (x+dx)*Cin + ci, x*Cout + co] = wq[co, ci, dy, dx], zero
    elsewhere, so  out[y, x*Cout+co] = sum_dy  xf[y+dy, :] @ W_big[dy].
    """
    cout, cin, kh, kw = wq.shape
    wt = jnp.transpose(wq.astype(jnp.float32), (2, 3, 1, 0))      # (kh,kw,ci,co)
    w2 = w + 2 * pw
    px = jnp.arange(w2)
    xs = jnp.arange(w)
    dx = px[:, None] - xs[None, :]                                 # (w2, w)
    valid = (dx >= 0) & (dx < kw)
    dxc = jnp.clip(dx, 0, kw - 1)
    g = wt[:, dxc, :, :]                                           # (kh,w2,w,ci,co)
    g = jnp.where(valid[None, :, :, None, None], g, 0.0)
    return jnp.transpose(g, (0, 1, 3, 2, 4)).reshape(kh, w2 * cin, w * cout)


# ----------------------------------------------------------------------------
# Kernel 1: per-strip conv (banded-weight matmuls) + per-channel sum / sum-sq
# partials for the BatchNorm batch statistics.
# ----------------------------------------------------------------------------
def _conv_stats_kernel(x_ref, w_ref, stats_ref, *, th, w, cout, kh, wcout):
    # x_ref:     (1, H+2, (W+2)*Cin)  whole padded image (lane-folded, f32)
    # w_ref:     (kh, (W+2)*Cin, W*Cout)   banded weights, resident
    # stats_ref: (1, 2, Cout)              this strip's [sum; sum_of_squares]
    j = pl.program_id(1)
    row0 = pl.multiple_of(j * th, th)

    acc = jnp.zeros((th, wcout), jnp.float32)
    for dy in range(kh):
        a = x_ref[0, pl.ds(row0 + dy, th), :]            # (th, (W+2)*Cin)
        acc = acc + jnp.dot(a, w_ref[dy], preferred_element_type=jnp.float32)

    col = jnp.sum(acc, axis=0, keepdims=True)            # (1, W*Cout)
    col2 = jnp.sum(acc * acc, axis=0, keepdims=True)     # (1, W*Cout)
    # Fold the W lane-groups per channel with cheap static lane slices
    # (no lane<->sublane reshape).
    s = jnp.zeros((1, cout), jnp.float32)
    ss = jnp.zeros((1, cout), jnp.float32)
    for x in range(w):
        s = s + col[:, x * cout:(x + 1) * cout]
        ss = ss + col2[:, x * cout:(x + 1) * cout]
    stats_ref[0, 0:1, :] = s
    stats_ref[0, 1:2, :] = ss


# ----------------------------------------------------------------------------
# Kernel 2: recompute the conv (identical f32 path), reduce the batch stats
# in-kernel, fold BN into scale/shift, apply + ReLU, lane-dense store.
# ----------------------------------------------------------------------------
def _conv_bn_relu_kernel(x_ref, w_ref, stats_ref, gamma_ref, beta_ref, o_ref,
                         *, th, w, cout, kh, wcout, inv_m, eps):
    j = pl.program_id(1)
    row0 = pl.multiple_of(j * th, th)

    acc = jnp.zeros((th, wcout), jnp.float32)
    for dy in range(kh):
        a = x_ref[0, pl.ds(row0 + dy, th), :]
        acc = acc + jnp.dot(a, w_ref[dy], preferred_element_type=jnp.float32)

    # Reduce the (N*strips, 2, Cout) partial stats and fold BN here so no XLA
    # op sits between the two pallas_calls.
    tot = jnp.sum(stats_ref[...], axis=0)                # (2, Cout)
    mean = tot[0:1, :] * inv_m
    var = tot[1:2, :] * inv_m - mean * mean              # biased (training)
    scale = gamma_ref[...] * jax.lax.rsqrt(var + eps)    # (1, Cout)
    shift = beta_ref[...] - mean * scale                 # (1, Cout)

    # Lane-tile (1, Cout) -> (1, W*Cout) via concat (matches folded layout).
    scale_t = jnp.concatenate([scale] * w, axis=1)
    shift_t = jnp.concatenate([shift] * w, axis=1)

    o_ref[0] = jnp.maximum(acc * scale_t + shift_t, 0.0)


# ----------------------------------------------------------------------------
# Host wrapper.
# ----------------------------------------------------------------------------
def conv_bn_relu(x_nchw, w, b, gamma, beta, *, eps=1e-5):
    """Conv2d(3x3, s=1, p=1) -> BatchNorm2d (training-mode stats) -> ReLU.

    The conv bias `b` shifts only the per-channel mean, which training-mode
    BatchNorm subtracts again, so it cancels exactly and is intentionally
    unused (this does NOT hold for eval-mode running statistics).
    """
    del b  # algebraically cancelled by the batch-norm mean subtraction
    n, cin, h, wd = x_nchw.shape
    cout, cin_w, kh, kw = w.shape
    assert cin_w == cin and kh == 3 and kw == 3, "specialised to 3x3, s=1, p=1"
    ph, pw = kh // 2, kw // 2

    xf = _fold_input(x_nchw, ph, pw)              # (N, H+2, (W+2)*Cin)
    wb = _banded_weight(w, wd, pw)                # (kh, (W+2)*Cin, W*Cout)
    gam = gamma.astype(jnp.float32).reshape(1, cout)
    bet = beta.astype(jnp.float32).reshape(1, cout)

    lanes_in = (wd + 2 * pw) * cin
    wcout = wd * cout
    th = 8 if (h % 8 == 0 and h > 8) else h       # 8-row strips when possible
    ns = h // th
    grid = (n, ns)

    x_spec = pl.BlockSpec((1, h + 2 * ph, lanes_in), lambda i, j: (i, 0, 0))
    w_spec = pl.BlockSpec((kh, lanes_in, wcout), lambda i, j: (0, 0, 0))

    blk_bytes = 4 * ((h + 2 * ph) * lanes_in      # x block (whole image)
                     + kh * lanes_in * wcout      # banded weight (resident)
                     + th * wcout)                # output / acc block
    vmem_limit = int(min(100 * 2 ** 20,
                         max(8 * 2 ** 20, 4 * blk_bytes + (2 << 20))))
    mxu_flops = 2 * n * kh * h * lanes_in * wcout

    # ---- pass 1: conv + per-strip partial batch statistics -----------------
    stats = pl.pallas_call(
        functools.partial(_conv_stats_kernel, th=th, w=wd, cout=cout,
                          kh=kh, wcout=wcout),
        out_shape=jax.ShapeDtypeStruct((n * ns, 2, cout), jnp.float32),
        grid_spec=pltpu.PrefetchScalarGridSpec(
            num_scalar_prefetch=0,
            grid=grid,
            in_specs=[x_spec, w_spec],
            out_specs=pl.BlockSpec((1, 2, cout),
                                   lambda i, j: (i * ns + j, 0, 0)),
        ),
        compiler_params=pltpu.CompilerParams(
            dimension_semantics=("parallel", "parallel"),
            vmem_limit_bytes=vmem_limit),
        cost_estimate=pl.CostEstimate(
            flops=mxu_flops, transcendentals=0,
            bytes_accessed=xf.size * 4 + wb.size * 4 + n * ns * 2 * cout * 4),
    )(xf, wb)

    # ---- pass 2: recompute conv, fold + apply BN scale/shift + ReLU --------
    out_folded = pl.pallas_call(
        functools.partial(_conv_bn_relu_kernel, th=th, w=wd, cout=cout,
                          kh=kh, wcout=wcout, inv_m=1.0 / (n * h * wd),
                          eps=eps),
        out_shape=jax.ShapeDtypeStruct((n, h, wcout), jnp.float32),
        grid_spec=pltpu.PrefetchScalarGridSpec(
            num_scalar_prefetch=0,
            grid=grid,
            in_specs=[
                x_spec,
                w_spec,
                pl.BlockSpec((n * ns, 2, cout), lambda i, j: (0, 0, 0)),
                pl.BlockSpec((1, cout), lambda i, j: (0, 0)),
                pl.BlockSpec((1, cout), lambda i, j: (0, 0)),
            ],
            out_specs=pl.BlockSpec((1, th, wcout), lambda i, j: (i, j, 0)),
        ),
        compiler_params=pltpu.CompilerParams(
            dimension_semantics=("parallel", "parallel"),
            vmem_limit_bytes=vmem_limit),
        cost_estimate=pl.CostEstimate(
            flops=mxu_flops, transcendentals=n * ns * cout,
            bytes_accessed=xf.size * 4 + wb.size * 4 + n * h * wcout * 4),
    )(xf, wb, stats, gam, bet)

    # ---- glue: unfold lanes and return NCHW to match PyTorch ---------------
    out = out_folded.reshape(n, h, wd, cout)
    return jnp.transpose(out, (0, 3, 1, 2))


# ----------------------------------------------------------------------------
# Pure-JAX reference for correctness checking.
# ----------------------------------------------------------------------------
def _reference(x_nchw, w, b, gamma, beta, eps=1e-5):
    y = jax.lax.conv_general_dilated(
        x_nchw.astype(jnp.float32), w.astype(jnp.float32),
        window_strides=(1, 1), padding=((1, 1), (1, 1)),
        dimension_numbers=("NCHW", "OIHW", "NCHW"))
    y = y + b.reshape(1, -1, 1, 1)
    mean = jnp.mean(y, axis=(0, 2, 3), keepdims=True)
    var = jnp.mean((y - mean) ** 2, axis=(0, 2, 3), keepdims=True)  # biased
    yn = (y - mean) * jax.lax.rsqrt(var + eps)
    yn = yn * gamma.reshape(1, -1, 1, 1) + beta.reshape(1, -1, 1, 1)
    return jnp.maximum(yn, 0.0)


if __name__ == "__main__":
    # Small shapes consistent with the module: Conv2d(in=4, out=8, 3x3, s=1, p=1)
    N, CIN, COUT, H, W = 2, 4, 8, 16, 16

    key = jax.random.PRNGKey(0)
    kx, kw_, kb, kg, kbt = jax.random.split(key, 5)

    x = jax.random.normal(kx, (N, CIN, H, W), dtype=jnp.float32)
    # deterministic synthetic parameters (mimic Conv2d / BatchNorm2d shapes)
    conv_w = jax.random.normal(kw_, (COUT, CIN, 3, 3), dtype=jnp.float32) * 0.1
    conv_b = jax.random.normal(kb, (COUT,), dtype=jnp.float32) * 0.1
    bn_gamma = 1.0 + 0.1 * jax.random.normal(kg, (COUT,), dtype=jnp.float32)
    bn_beta = 0.1 * jax.random.normal(kbt, (COUT,), dtype=jnp.float32)

    fused = jax.jit(conv_bn_relu)
    out = jax.block_until_ready(fused(x, conv_w, conv_b, bn_gamma, bn_beta))
    ref = jax.block_until_ready(
        _reference(x, conv_w, conv_b, bn_gamma, bn_beta))

    assert out.shape == (N, COUT, H, W)
    max_err = float(jnp.max(jnp.abs(out - ref)))
    assert jnp.allclose(out, ref, atol=1e-4, rtol=1e-4), f"max err {max_err}"

    print("KERNEL_OK")
</pallas_src>

<mosaic_0001>
module attributes {stable_mosaic.version = 11 : i64} {
  func.func @_conv_stats_kernel(%arg0: i32, %arg1: i32, %arg2: memref<1x18x72xf32, #tpu.memory_space<vmem>>, %arg3: memref<3x72x128xf32, #tpu.memory_space<vmem>>, %arg4: memref<1x2x8xf32, #tpu.memory_space<vmem>>) attributes {dimension_semantics = [#tpu.dimension_semantics<parallel>, #tpu.dimension_semantics<parallel>], iteration_bounds = array<i64: 2, 2>, scalar_prefetch = 0 : i64, scratch_operands = 0 : i64, tpu.core_type = #tpu.core_type<tc>, window_params = [{transform_indices = @transform_0, window_bounds = array<i64: 1, 18, 72>}, {pipeline_mode = #tpu.pipeline_mode<synchronous>, transform_indices = @transform_1, window_bounds = array<i64: 3, 72, 128>}, {transform_indices = @transform_2, window_bounds = array<i64: 1, 2, 8>}]} {
    %c8_i32 = arith.constant 8 : i32
    %0 = arith.muli %arg1, %c8_i32 : i32
    %1 = tpu.assume_multiple %0, 8 : i32
    %cst = arith.constant 0.000000e+00 : f32
    %2 = vector.broadcast %cst : f32 to vector<8x128xf32>
    %c0_i32 = arith.constant 0 : i32
    %3 = arith.addi %1, %c0_i32 : i32
    %c0 = arith.constant 0 : index
    %4 = arith.index_cast %3 : i32 to index
    %c0_0 = arith.constant 0 : index
    %5 = vector.load %arg2[%c0, %4, %c0_0] : memref<1x18x72xf32, #tpu.memory_space<vmem>>, vector<1x8x72xf32>
    %6 = vector.shape_cast %5 : vector<1x8x72xf32> to vector<8x72xf32>
    %c0_1 = arith.constant 0 : index
    %c0_2 = arith.constant 0 : index
    %c0_3 = arith.constant 0 : index
    %7 = vector.load %arg3[%c0_1, %c0_2, %c0_3] : memref<3x72x128xf32, #tpu.memory_space<vmem>>, vector<1x72x128xf32>
    %8 = vector.shape_cast %7 : vector<1x72x128xf32> to vector<72x128xf32>
    %cst_4 = arith.constant dense<0.000000e+00> : vector<8x128xf32>
    %9 = tpu.matmul %6, %8, %cst_4 {dimension_numbers = #tpu.dot_dimension_numbers<[1], [0], [0], [1], [0, 0, 1, 1], [], []>} : vector<8x72xf32>, vector<72x128xf32>, vector<8x128xf32> -> vector<8x128xf32>
    %10 = arith.addf %2, %9 : vector<8x128xf32>
    %c1_i32 = arith.constant 1 : i32
    %11 = arith.addi %1, %c1_i32 : i32
    %c0_5 = arith.constant 0 : index
    %12 = arith.index_cast %11 : i32 to index
    %c0_6 = arith.constant 0 : index
    %13 = vector.load %arg2[%c0_5, %12, %c0_6] : memref<1x18x72xf32, #tpu.memory_space<vmem>>, vector<1x8x72xf32>
    %14 = vector.shape_cast %13 : vector<1x8x72xf32> to vector<8x72xf32>
    %c1 = arith.constant 1 : index
    %c0_7 = arith.constant 0 : index
    %c0_8 = arith.constant 0 : index
    %15 = vector.load %arg3[%c1, %c0_7, %c0_8] : memref<3x72x128xf32, #tpu.memory_space<vmem>>, vector<1x72x128xf32>
    %16 = vector.shape_cast %15 : vector<1x72x128xf32> to vector<72x128xf32>
    %cst_9 = arith.constant dense<0.000000e+00> : vector<8x128xf32>
    %17 = tpu.matmul %14, %16, %cst_9 {dimension_numbers = #tpu.dot_dimension_numbers<[1], [0], [0], [1], [0, 0, 1, 1], [], []>} : vector<8x72xf32>, vector<72x128xf32>, vector<8x128xf32> -> vector<8x128xf32>
    %18 = arith.addf %10, %17 : vector<8x128xf32>
    %c2_i32 = arith.constant 2 : i32
    %19 = arith.addi %1, %c2_i32 : i32
    %c0_10 = arith.constant 0 : index
    %20 = arith.index_cast %19 : i32 to index
    %c0_11 = arith.constant 0 : index
    %21 = vector.load %arg2[%c0_10, %20, %c0_11] : memref<1x18x72xf32, #tpu.memory_space<vmem>>, vector<1x8x72xf32>
    %22 = vector.shape_cast %21 : vector<1x8x72xf32> to vector<8x72xf32>
    %c2 = arith.constant 2 : index
    %c0_12 = arith.constant 0 : index
    %c0_13 = arith.constant 0 : index
    %23 = vector.load %arg3[%c2, %c0_12, %c0_13] : memref<3x72x128xf32, #tpu.memory_space<vmem>>, vector<1x72x128xf32>
    %24 = vector.shape_cast %23 : vector<1x72x128xf32> to vector<72x128xf32>
    %cst_14 = arith.constant dense<0.000000e+00> : vector<8x128xf32>
    %25 = tpu.matmul %22, %24, %cst_14 {dimension_numbers = #tpu.dot_dimension_numbers<[1], [0], [0], [1], [0, 0, 1, 1], [], []>} : vector<8x72xf32>, vector<72x128xf32>, vector<8x128xf32> -> vector<8x128xf32>
    %26 = arith.addf %18, %25 : vector<8x128xf32>
    %cst_15 = arith.constant dense<0.000000e+00> : vector<128xf32>
    %27 = vector.multi_reduction <add>, %26, %cst_15 [0] : vector<8x128xf32> to vector<128xf32>
    %28 = vector.shape_cast %27 : vector<128xf32> to vector<1x128xf32>
    %29 = arith.mulf %26, %26 : vector<8x128xf32>
    %cst_16 = arith.constant dense<0.000000e+00> : vector<128xf32>
    %30 = vector.multi_reduction <add>, %29, %cst_16 [0] : vector<8x128xf32> to vector<128xf32>
    %31 = vector.shape_cast %30 : vector<128xf32> to vector<1x128xf32>
    %cst_17 = arith.constant 0.000000e+00 : f32
    %32 = vector.broadcast %cst_17 : f32 to vector<1x8xf32>
    %cst_18 = arith.constant 0.000000e+00 : f32
    %33 = vector.broadcast %cst_18 : f32 to vector<1x8xf32>
    %34 = vector.extract_strided_slice %28 {offsets = [0, 0], sizes = [1, 8], strides = [1, 1]} : vector<1x128xf32> to vector<1x8xf32>
    %35 = arith.addf %32, %34 : vector<1x8xf32>
    %36 = vector.extract_strided_slice %31 {offsets = [0, 0], sizes = [1, 8], strides = [1, 1]} : vector<1x128xf32> to vector<1x8xf32>
    %37 = arith.addf %33, %36 : vector<1x8xf32>
    %38 = vector.extract_strided_slice %28 {offsets = [0, 8], sizes = [1, 8], strides = [1, 1]} : vector<1x128xf32> to vector<1x8xf32>
    %39 = arith.addf %35, %38 : vector<1x8xf32>
    %40 = vector.extract_strided_slice %31 {offsets = [0, 8], sizes = [1, 8], strides = [1, 1]} : vector<1x128xf32> to vector<1x8xf32>
    %41 = arith.addf %37, %40 : vector<1x8xf32>
    %42 = vector.extract_strided_slice %28 {offsets = [0, 16], sizes = [1, 8], strides = [1, 1]} : vector<1x128xf32> to vector<1x8xf32>
    %43 = arith.addf %39, %42 : vector<1x8xf32>
    %44 = vector.extract_strided_slice %31 {offsets = [0, 16], sizes = [1, 8], strides = [1, 1]} : vector<1x128xf32> to vector<1x8xf32>
    %45 = arith.addf %41, %44 : vector<1x8xf32>
    %46 = vector.extract_strided_slice %28 {offsets = [0, 24], sizes = [1, 8], strides = [1, 1]} : vector<1x128xf32> to vector<1x8xf32>
    %47 = arith.addf %43, %46 : vector<1x8xf32>
    %48 = vector.extract_strided_slice %31 {offsets = [0, 24], sizes = [1, 8], strides = [1, 1]} : vector<1x128xf32> to vector<1x8xf32>
    %49 = arith.addf %45, %48 : vector<1x8xf32>
    %50 = vector.extract_strided_slice %28 {offsets = [0, 32], sizes = [1, 8], strides = [1, 1]} : vector<1x128xf32> to vector<1x8xf32>
    %51 = arith.addf %47, %50 : vector<1x8xf32>
    %52 = vector.extract_strided_slice %31 {offsets = [0, 32], sizes = [1, 8], strides = [1, 1]} : vector<1x128xf32> to vector<1x8xf32>
    %53 = arith.addf %49, %52 : vector<1x8xf32>
    %54 = vector.extract_strided_slice %28 {offsets = [0, 40], sizes = [1, 8], strides = [1, 1]} : vector<1x128xf32> to vector<1x8xf32>
    %55 = arith.addf %51, %54 : vector<1x8xf32>
    %56 = vector.extract_strided_slice %31 {offsets = [0, 40], sizes = [1, 8], strides = [1, 1]} : vector<1x128xf32> to vector<1x8xf32>
    %57 = arith.addf %53, %56 : vector<1x8xf32>
    %58 = vector.extract_strided_slice %28 {offsets = [0, 48], sizes = [1, 8], strides = [1, 1]} : vector<1x128xf32> to vector<1x8xf32>
    %59 = arith.addf %55, %58 : vector<1x8xf32>
    %60 = vector.extract_strided_slice %31 {offsets = [0, 48], sizes = [1, 8], strides = [1, 1]} : vector<1x128xf32> to vector<1x8xf32>
    %61 = arith.addf %57, %60 : vector<1x8xf32>
    %62 = vector.extract_strided_slice %28 {offsets = [0, 56], sizes = [1, 8], strides = [1, 1]} : vector<1x128xf32> to vector<1x8xf32>
    %63 = arith.addf %59, %62 : vector<1x8xf32>
    %64 = vector.extract_strided_slice %31 {offsets = [0, 56], sizes = [1, 8], strides = [1, 1]} : vector<1x128xf32> to vector<1x8xf32>
    %65 = arith.addf %61, %64 : vector<1x8xf32>
    %66 = vector.extract_strided_slice %28 {offsets = [0, 64], sizes = [1, 8], strides = [1, 1]} : vector<1x128xf32> to vector<1x8xf32>
    %67 = arith.addf %63, %66 : vector<1x8xf32>
    %68 = vector.extract_strided_slice %31 {offsets = [0, 64], sizes = [1, 8], strides = [1, 1]} : vector<1x128xf32> to vector<1x8xf32>
    %69 = arith.addf %65, %68 : vector<1x8xf32>
    %70 = vector.extract_strided_slice %28 {offsets = [0, 72], sizes = [1, 8], strides = [1, 1]} : vector<1x128xf32> to vector<1x8xf32>
    %71 = arith.addf %67, %70 : vector<1x8xf32>
    %72 = vector.extract_strided_slice %31 {offsets = [0, 72], sizes = [1, 8], strides = [1, 1]} : vector<1x128xf32> to vector<1x8xf32>
    %73 = arith.addf %69, %72 : vector<1x8xf32>
    %74 = vector.extract_strided_slice %28 {offsets = [0, 80], sizes = [1, 8], strides = [1, 1]} : vector<1x128xf32> to vector<1x8xf32>
    %75 = arith.addf %71, %74 : vector<1x8xf32>
    %76 = vector.extract_strided_slice %31 {offsets = [0, 80], sizes = [1, 8], strides = [1, 1]} : vector<1x128xf32> to vector<1x8xf32>
    %77 = arith.addf %73, %76 : vector<1x8xf32>
    %78 = vector.extract_strided_slice %28 {offsets = [0, 88], sizes = [1, 8], strides = [1, 1]} : vector<1x128xf32> to vector<1x8xf32>
    %79 = arith.addf %75, %78 : vector<1x8xf32>
    %80 = vector.extract_strided_slice %31 {offsets = [0, 88], sizes = [1, 8], strides = [1, 1]} : vector<1x128xf32> to vector<1x8xf32>
    %81 = arith.addf %77, %80 : vector<1x8xf32>
    %82 = vector.extract_strided_slice %28 {offsets = [0, 96], sizes = [1, 8], strides = [1, 1]} : vector<1x128xf32> to vector<1x8xf32>
    %83 = arith.addf %79, %82 : vector<1x8xf32>
    %84 = vector.extract_strided_slice %31 {offsets = [0, 96], sizes = [1, 8], strides = [1, 1]} : vector<1x128xf32> to vector<1x8xf32>
    %85 = arith.addf %81, %84 : vector<1x8xf32>
    %86 = vector.extract_strided_slice %28 {offsets = [0, 104], sizes = [1, 8], strides = [1, 1]} : vector<1x128xf32> to vector<1x8xf32>
    %87 = arith.addf %83, %86 : vector<1x8xf32>
    %88 = vector.extract_strided_slice %31 {offsets = [0, 104], sizes = [1, 8], strides = [1, 1]} : vector<1x128xf32> to vector<1x8xf32>
    %89 = arith.addf %85, %88 : vector<1x8xf32>
    %90 = vector.extract_strided_slice %28 {offsets = [0, 112], sizes = [1, 8], strides = [1, 1]} : vector<1x128xf32> to vector<1x8xf32>
    %91 = arith.addf %87, %90 : vector<1x8xf32>
    %92 = vector.extract_strided_slice %31 {offsets = [0, 112], sizes = [1, 8], strides = [1, 1]} : vector<1x128xf32> to vector<1x8xf32>
    %93 = arith.addf %89, %92 : vector<1x8xf32>
    %94 = vector.extract_strided_slice %28 {offsets = [0, 120], sizes = [1, 8], strides = [1, 1]} : vector<1x128xf32> to vector<1x8xf32>
    %95 = arith.addf %91, %94 : vector<1x8xf32>
    %96 = vector.extract_strided_slice %31 {offsets = [0, 120], sizes = [1, 8], strides = [1, 1]} : vector<1x128xf32> to vector<1x8xf32>
    %97 = arith.addf %93, %96 : vector<1x8xf32>
    %c0_19 = arith.constant 0 : index
    %c0_20 = arith.constant 0 : index
    %c0_21 = arith.constant 0 : index
    %98 = vector.load %arg4[%c0_19, %c0_20, %c0_21] : memref<1x2x8xf32, #tpu.memory_space<vmem>>, vector<1x1x8xf32>
    %99 = vector.shape_cast %98 : vector<1x1x8xf32> to vector<1x8xf32>
    %100 = vector.shape_cast %95 : vector<1x8xf32> to vector<1x1x8xf32>
    tpu.vector_store %arg4[%c0_19, %c0_20, %c0_21], %100 {strides = array<i32>} : memref<1x2x8xf32, #tpu.memory_space<vmem>>, vector<1x1x8xf32>,
    %c0_22 = arith.constant 0 : index
    %c1_23 = arith.constant 1 : index
    %c0_24 = arith.constant 0 : index
    %101 = vector.load %arg4[%c0_22, %c1_23, %c0_24] : memref<1x2x8xf32, #tpu.memory_space<vmem>>, vector<1x1x8xf32>
    %102 = vector.shape_cast %101 : vector<1x1x8xf32> to vector<1x8xf32>
    %103 = vector.shape_cast %97 : vector<1x8xf32> to vector<1x1x8xf32>
    tpu.vector_store %arg4[%c0_22, %c1_23, %c0_24], %103 {strides = array<i32>} : memref<1x2x8xf32, #tpu.memory_space<vmem>>, vector<1x1x8xf32>,
    return
  }
  func.func @transform_0(%arg0: i32, %arg1: i32) -> (i32, i32, i32) {
    %c0_i32 = arith.constant 0 : i32
    %c0_i32_0 = arith.constant 0 : i32
    %c0_i32_1 = arith.constant 0 : i32
    return %arg0, %c0_i32, %c0_i32_0 : i32, i32, i32
  }
  func.func @transform_1(%arg0: i32, %arg1: i32) -> (i32, i32, i32) {
    %c0_i32 = arith.constant 0 : i32
    %c0_i32_0 = arith.constant 0 : i32
    %c0_i32_1 = arith.constant 0 : i32
    %c0_i32_2 = arith.constant 0 : i32
    return %c0_i32, %c0_i32_0, %c0_i32_1 : i32, i32, i32
  }
  func.func @transform_2(%arg0: i32, %arg1: i32) -> (i32, i32, i32) {
    %c2_i32 = arith.constant 2 : i32
    %0 = arith.muli %arg0, %c2_i32 : i32
    %1 = arith.addi %0, %arg1 : i32
    %c0_i32 = arith.constant 0 : i32
    %c0_i32_0 = arith.constant 0 : i32
    %c0_i32_1 = arith.constant 0 : i32
    return %1, %c0_i32, %c0_i32_0 : i32, i32, i32
  }
}

module attributes {stable_mosaic.version = 11 : i64} {
  func.func @_conv_bn_relu_kernel(%arg0: i32, %arg1: i32, %arg2: memref<1x18x72xf32, #tpu.memory_space<vmem>>, %arg3: memref<3x72x128xf32, #tpu.memory_space<vmem>>, %arg4: memref<4x2x8xf32, #tpu.memory_space<vmem>>, %arg5: memref<1x8xf32, #tpu.memory_space<vmem>>, %arg6: memref<1x8xf32, #tpu.memory_space<vmem>>, %arg7: memref<1x8x128xf32, #tpu.memory_space<vmem>>) attributes {dimension_semantics = [#tpu.dimension_semantics<parallel>, #tpu.dimension_semantics<parallel>], iteration_bounds = array<i64: 2, 2>, scalar_prefetch = 0 : i64, scratch_operands = 0 : i64, tpu.core_type = #tpu.core_type<tc>, window_params = [{transform_indices = @transform_0, window_bounds = array<i64: 1, 18, 72>}, {pipeline_mode = #tpu.pipeline_mode<synchronous>, transform_indices = @transform_1, window_bounds = array<i64: 3, 72, 128>}, {pipeline_mode = #tpu.pipeline_mode<synchronous>, transform_indices = @transform_2, window_bounds = array<i64: 4, 2, 8>}, {pipeline_mode = #tpu.pipeline_mode<synchronous>, transform_indices = @transform_3, window_bounds = array<i64: 1, 8>}, {pipeline_mode = #tpu.pipeline_mode<synchronous>, transform_indices = @transform_4, window_bounds = array<i64: 1, 8>}, {transform_indices = @transform_5, window_bounds = array<i64: 1, 8, 128>}]} {
    %c8_i32 = arith.constant 8 : i32
    %0 = arith.muli %arg1, %c8_i32 : i32
    %1 = tpu.assume_multiple %0, 8 : i32
    %cst = arith.constant 0.000000e+00 : f32
    %2 = vector.broadcast %cst : f32 to vector<8x128xf32>
    %c0_i32 = arith.constant 0 : i32
    %3 = arith.addi %1, %c0_i32 : i32
    %c0 = arith.constant 0 : index
    %4 = arith.index_cast %3 : i32 to index
    %c0_0 = arith.constant 0 : index
    %5 = vector.load %arg2[%c0, %4, %c0_0] : memref<1x18x72xf32, #tpu.memory_space<vmem>>, vector<1x8x72xf32>
    %6 = vector.shape_cast %5 : vector<1x8x72xf32> to vector<8x72xf32>
    %c0_1 = arith.constant 0 : index
    %c0_2 = arith.constant 0 : index
    %c0_3 = arith.constant 0 : index
    %7 = vector.load %arg3[%c0_1, %c0_2, %c0_3] : memref<3x72x128xf32, #tpu.memory_space<vmem>>, vector<1x72x128xf32>
    %8 = vector.shape_cast %7 : vector<1x72x128xf32> to vector<72x128xf32>
    %cst_4 = arith.constant dense<0.000000e+00> : vector<8x128xf32>
    %9 = tpu.matmul %6, %8, %cst_4 {dimension_numbers = #tpu.dot_dimension_numbers<[1], [0], [0], [1], [0, 0, 1, 1], [], []>} : vector<8x72xf32>, vector<72x128xf32>, vector<8x128xf32> -> vector<8x128xf32>
    %10 = arith.addf %2, %9 : vector<8x128xf32>
    %c1_i32 = arith.constant 1 : i32
    %11 = arith.addi %1, %c1_i32 : i32
    %c0_5 = arith.constant 0 : index
    %12 = arith.index_cast %11 : i32 to index
    %c0_6 = arith.constant 0 : index
    %13 = vector.load %arg2[%c0_5, %12, %c0_6] : memref<1x18x72xf32, #tpu.memory_space<vmem>>, vector<1x8x72xf32>
    %14 = vector.shape_cast %13 : vector<1x8x72xf32> to vector<8x72xf32>
    %c1 = arith.constant 1 : index
    %c0_7 = arith.constant 0 : index
    %c0_8 = arith.constant 0 : index
    %15 = vector.load %arg3[%c1, %c0_7, %c0_8] : memref<3x72x128xf32, #tpu.memory_space<vmem>>, vector<1x72x128xf32>
    %16 = vector.shape_cast %15 : vector<1x72x128xf32> to vector<72x128xf32>
    %cst_9 = arith.constant dense<0.000000e+00> : vector<8x128xf32>
    %17 = tpu.matmul %14, %16, %cst_9 {dimension_numbers = #tpu.dot_dimension_numbers<[1], [0], [0], [1], [0, 0, 1, 1], [], []>} : vector<8x72xf32>, vector<72x128xf32>, vector<8x128xf32> -> vector<8x128xf32>
    %18 = arith.addf %10, %17 : vector<8x128xf32>
    %c2_i32 = arith.constant 2 : i32
    %19 = arith.addi %1, %c2_i32 : i32
    %c0_10 = arith.constant 0 : index
    %20 = arith.index_cast %19 : i32 to index
    %c0_11 = arith.constant 0 : index
    %21 = vector.load %arg2[%c0_10, %20, %c0_11] : memref<1x18x72xf32, #tpu.memory_space<vmem>>, vector<1x8x72xf32>
    %22 = vector.shape_cast %21 : vector<1x8x72xf32> to vector<8x72xf32>
    %c2 = arith.constant 2 : index
    %c0_12 = arith.constant 0 : index
    %c0_13 = arith.constant 0 : index
    %23 = vector.load %arg3[%c2, %c0_12, %c0_13] : memref<3x72x128xf32, #tpu.memory_space<vmem>>, vector<1x72x128xf32>
    %24 = vector.shape_cast %23 : vector<1x72x128xf32> to vector<72x128xf32>
    %cst_14 = arith.constant dense<0.000000e+00> : vector<8x128xf32>
    %25 = tpu.matmul %22, %24, %cst_14 {dimension_numbers = #tpu.dot_dimension_numbers<[1], [0], [0], [1], [0, 0, 1, 1], [], []>} : vector<8x72xf32>, vector<72x128xf32>, vector<8x128xf32> -> vector<8x128xf32>
    %26 = arith.addf %18, %25 : vector<8x128xf32>
    %c0_15 = arith.constant 0 : index
    %c0_16 = arith.constant 0 : index
    %c0_17 = arith.constant 0 : index
    %27 = vector.load %arg4[%c0_15, %c0_16, %c0_17] : memref<4x2x8xf32, #tpu.memory_space<vmem>>, vector<4x2x8xf32>
    %cst_18 = arith.constant dense<0.000000e+00> : vector<2x8xf32>
    %28 = vector.multi_reduction <add>, %27, %cst_18 [0] : vector<4x2x8xf32> to vector<2x8xf32>
    %29 = vector.extract_strided_slice %28 {offsets = [0, 0], sizes = [1, 8], strides = [1, 1]} : vector<2x8xf32> to vector<1x8xf32>
    %cst_19 = arith.constant 0.001953125 : f32
    %30 = vector.broadcast %cst_19 : f32 to vector<1x8xf32>
    %31 = arith.mulf %29, %30 : vector<1x8xf32>
    %32 = vector.extract_strided_slice %28 {offsets = [1, 0], sizes = [1, 8], strides = [1, 1]} : vector<2x8xf32> to vector<1x8xf32>
    %cst_20 = arith.constant 0.001953125 : f32
    %33 = vector.broadcast %cst_20 : f32 to vector<1x8xf32>
    %34 = arith.mulf %32, %33 : vector<1x8xf32>
    %35 = arith.mulf %31, %31 : vector<1x8xf32>
    %36 = arith.subf %34, %35 : vector<1x8xf32>
    %c0_21 = arith.constant 0 : index
    %c0_22 = arith.constant 0 : index
    %37 = vector.load %arg5[%c0_21, %c0_22] : memref<1x8xf32, #tpu.memory_space<vmem>>, vector<1x8xf32>
    %cst_23 = arith.constant 9.99999974E-6 : f32
    %38 = vector.broadcast %cst_23 : f32 to vector<1x8xf32>
    %39 = arith.addf %36, %38 : vector<1x8xf32>
    %40 = math.rsqrt %39 : vector<1x8xf32>
    %41 = arith.mulf %37, %40 : vector<1x8xf32>
    %c0_24 = arith.constant 0 : index
    %c0_25 = arith.constant 0 : index
    %42 = vector.load %arg6[%c0_24, %c0_25] : memref<1x8xf32, #tpu.memory_space<vmem>>, vector<1x8xf32>
    %43 = arith.mulf %31, %41 : vector<1x8xf32>
    %44 = arith.subf %42, %43 : vector<1x8xf32>
    %45 = tpu.concatenate %41, %41, %41, %41, %41, %41, %41, %41, %41, %41, %41, %41, %41, %41, %41, %41 in 1 : vector<1x8xf32>, vector<1x8xf32>, vector<1x8xf32>, vector<1x8xf32>, vector<1x8xf32>, vector<1x8xf32>, vector<1x8xf32>, vector<1x8xf32>, vector<1x8xf32>, vector<1x8xf32>, vector<1x8xf32>, vector<1x8xf32>, vector<1x8xf32>, vector<1x8xf32>, vector<1x8xf32>, vector<1x8xf32> -> vector<1x128xf32>
    %46 = tpu.concatenate %44, %44, %44, %44, %44, %44, %44, %44, %44, %44, %44, %44, %44, %44, %44, %44 in 1 : vector<1x8xf32>, vector<1x8xf32>, vector<1x8xf32>, vector<1x8xf32>, vector<1x8xf32>, vector<1x8xf32>, vector<1x8xf32>, vector<1x8xf32>, vector<1x8xf32>, vector<1x8xf32>, vector<1x8xf32>, vector<1x8xf32>, vector<1x8xf32>, vector<1x8xf32>, vector<1x8xf32>, vector<1x8xf32> -> vector<1x128xf32>
    %47 = vector.broadcast %45 : vector<1x128xf32> to vector<8x128xf32>
    %48 = arith.mulf %26, %47 : vector<8x128xf32>
    %49 = vector.broadcast %46 : vector<1x128xf32> to vector<8x128xf32>
    %50 = arith.addf %48, %49 : vector<8x128xf32>
    %cst_26 = arith.constant 0.000000e+00 : f32
    %51 = vector.broadcast %cst_26 : f32 to vector<8x128xf32>
    %52 = arith.maximumf %50, %51 : vector<8x128xf32>
    %c0_27 = arith.constant 0 : index
    %c0_28 = arith.constant 0 : index
    %c0_29 = arith.constant 0 : index
    %53 = vector.load %arg7[%c0_27, %c0_28, %c0_29] : memref<1x8x128xf32, #tpu.memory_space<vmem>>, vector<1x8x128xf32>
    %54 = vector.shape_cast %53 : vector<1x8x128xf32> to vector<8x128xf32>
    %55 = vector.shape_cast %52 : vector<8x128xf32> to vector<1x8x128xf32>
    tpu.vector_store %arg7[%c0_27, %c0_28, %c0_29], %55 {strides = array<i32>} : memref<1x8x128xf32, #tpu.memory_space<vmem>>, vector<1x8x128xf32>,
    return
  }
  func.func @transform_0(%arg0: i32, %arg1: i32) -> (i32, i32, i32) {
    %c0_i32 = arith.constant 0 : i32
    %c0_i32_0 = arith.constant 0 : i32
    %c0_i32_1 = arith.constant 0 : i32
    return %arg0, %c0_i32, %c0_i32_0 : i32, i32, i32
  }
  func.func @transform_1(%arg0: i32, %arg1: i32) -> (i32, i32, i32) {
    %c0_i32 = arith.constant 0 : i32
    %c0_i32_0 = arith.constant 0 : i32
    %c0_i32_1 = arith.constant 0 : i32
    %c0_i32_2 = arith.constant 0 : i32
    return %c0_i32, %c0_i32_0, %c0_i32_1 : i32, i32, i32
  }
  func.func @transform_2(%arg0: i32, %arg1: i32) -> (i32, i32, i32) {
    %c0_i32 = arith.constant 0 : i32
    %c0_i32_0 = arith.constant 0 : i32
    %c0_i32_1 = arith.constant 0 : i32
    %c0_i32_2 = arith.constant 0 : i32
    return %c0_i32, %c0_i32_0, %c0_i32_1 : i32, i32, i32
  }
  func.func @transform_3(%arg0: i32, %arg1: i32) -> (i32, i32) {
    %c0_i32 = arith.constant 0 : i32
    %c0_i32_0 = arith.constant 0 : i32
    %c0_i32_1 = arith.constant 0 : i32
    return %c0_i32, %c0_i32_0 : i32, i32
  }
  func.func @transform_4(%arg0: i32, %arg1: i32) -> (i32, i32) {
    %c0_i32 = arith.constant 0 : i32
    %c0_i32_0 = arith.constant 0 : i32
    %c0_i32_1 = arith.constant 0 : i32
    return %c0_i32, %c0_i32_0 : i32, i32
  }
  func.func @transform_5(%arg0: i32, %arg1: i32) -> (i32, i32, i32) {
    %c0_i32 = arith.constant 0 : i32
    %c0_i32_0 = arith.constant 0 : i32
    return %arg0, %arg1, %c0_i32 : i32, i32, i32
  }
}

</mosaic_0001>

<llo_original>
// kernel: conv_bn_relu.2
$region0: #{conv_bn_relu.2}
  #allocation0 [shape = 'u32[]', space=smem, size = 0x4, offset = 0x4, fixed_abs, tag = 'smem constant byte address 0x4 - core index']
  #allocation1 [shape = 'u32[144,128]{1,0:T(1,128)}', space=vmem, size = 0x12000, scoped, tag = 'internal scratch']
  %s0 = inlined_call_operand.vmem [shape: f32[2,18,72], index: 0, kind: input, shape index: {}]
  %s1 = inlined_call_operand.vmem [shape: f32[3,72,128], index: 1, kind: input, shape index: {}]
  %s2 = inlined_call_operand.vmem [shape: f32[4,2,8], index: 2, kind: output, shape index: {}]
  %s3 = sld [smem:[#allocation0]]
  $region41: #{conv_bn_relu.2} parent=0
    _
  %s5 = ssub.s32 1, %s3
  %s6 = scalar_select 0, %s5, %s3
  loop: start=0, step=1, limit=6
  $region2: #{conv_bn_relu.2} parent=0 // loop_pre_header
    _
  $region3: #{conv_bn_relu.2} parent=0 // loop_header
    %s8 = sphi 0, %s12
    %p9 = scmp.ge.s32.totalorder %s8, 6
    %s15 = sphi 0, %s27
    %s16 = sphi 0, %s23
    %s17 = sphi 0, %s15
    %s18 = sphi 0, %s16
    %s19 = sphi 0, %s17
    %s20 = sphi 0, %s18
    %s30 = sphi 0, %s32
    %s33 = sphi 0, %s30
    %s34 = sphi 0, %s33
    %s50 = sphi 0, %s34
    %s54 = sphi 0, %s54
    %s56 = sphi 0, %s54
    %s57 = sphi 0, %s56
    %s71 = sphi 0, %s57
    %s81 = sphi 0, %s83
    %s84 = sphi 0, %s81
    %s85 = sphi 0, %s84
    %s101 = sphi 0, %s85
  $region4: #{conv_bn_relu.2} parent=0 // loop_header_branch
    %11 = sbr.rel (%p9) target = $region8
  $region5: #{conv_bn_relu.2} parent=0 // loop_body
    %s13 = ssub.s32 %s8, 1
    %s14 = ssub.s32 %s8, 2
    %s21 = sadd.s32 1, %s16
    %p22 = scmp.ge.s32.totalorder %s21, 2
    %s23 = scalar_select %p22, 0, %s21
    %s24 = sadd.s32 1, %s15
    %s25 = scalar_select %p22, %s24, %s15
    %p26 = scmp.ge.s32.totalorder %s25, 2
    %s27 = scalar_select %p26, 0, %s25
    %s28 = ssub.s32 %s15, %s27
    %p29 = scmp.eq.s32.totalorder %s28, 0
    %s31 = sadd.s32 %s30, 1
    %s32 = scalar_select %p29, %s30, %s31
    %p35 = pneg %p29
    %p36 = scmp.eq.s32.totalorder %s8, 3
    %p37 = por %p35, %p36
    %p38 = scmp.ne.s32.totalorder %s30, %s33
    %p39 = scmp.eq.s32.totalorder %s8, 0
    %p40 = por %p38, %p39
    %p41 = scmp.ne.s32.totalorder %s30, %s33
    %p42 = scmp.eq.s32.totalorder %s13, 3
    %p43 = por %p41, %p42
    %p44 = scmp.ne.s32.totalorder %s33, %s34
    %p45 = scmp.eq.s32.totalorder %s13, 0
    %p46 = por %p44, %p45
    %p47 = scmp.ne.s32.totalorder %s33, %s34
    %p48 = scmp.eq.s32.totalorder %s14, 3
    %p49 = por %p47, %p48
    %p51 = scmp.ne.s32.totalorder %s34, %s50
    %p52 = scmp.eq.s32.totalorder %s14, 0
    %p53 = por %p51, %p52
    %s55 = sadd.s32 %s54, 1
    %p58 = scmp.eq.s32.totalorder %s8, 3
    %p59 = scmp.ne.s32.totalorder %s54, %s56
    %p60 = scmp.eq.s32.totalorder %s8, 0
    %p61 = por %p59, %p60
    %p62 = scmp.ne.s32.totalorder %s54, %s56
    %p63 = scmp.eq.s32.totalorder %s13, 3
    %p64 = por %p62, %p63
    %p65 = scmp.ne.s32.totalorder %s56, %s57
    %p66 = scmp.eq.s32.totalorder %s13, 0
    %p67 = por %p65, %p66
    %p68 = scmp.ne.s32.totalorder %s56, %s57
    %p69 = scmp.eq.s32.totalorder %s14, 3
    %p70 = por %p68, %p69
    %p72 = scmp.ne.s32.totalorder %s57, %s71
    %p73 = scmp.eq.s32.totalorder %s14, 0
    %p74 = por %p72, %p73
    %s75 = smul.u32 %s15, 2
    %s76 = sadd.s32 %s75, %s16
    %s77 = smul.u32 %s27, 2
    %s78 = sadd.s32 %s77, %s23
    %s79 = ssub.s32 %s76, %s78
    %p80 = scmp.eq.s32.totalorder %s79, 0
    %s82 = sadd.s32 %s81, 1
    %s83 = scalar_select %p80, %s81, %s82
    %p86 = pneg %p80
    %p87 = scmp.eq.s32.totalorder %s8, 3
    %p88 = por %p86, %p87
    %p89 = scmp.ne.s32.totalorder %s81, %s84
    %p90 = scmp.eq.s32.totalorder %s8, 0
    %p91 = por %p89, %p90
    %p92 = scmp.ne.s32.totalorder %s81, %s84
    %p93 = scmp.eq.s32.totalorder %s13, 3
    %p94 = por %p92, %p93
    %p95 = scmp.ne.s32.totalorder %s84, %s85
    %p96 = scmp.eq.s32.totalorder %s13, 0
    %p97 = por %p95, %p96
    %p98 = scmp.ne.s32.totalorder %s84, %s85
    %p99 = scmp.eq.s32.totalorder %s14, 3
    %p100 = por %p98, %p99
    %p102 = scmp.ne.s32.totalorder %s85, %s101
    %p103 = scmp.eq.s32.totalorder %s14, 0
    %p104 = por %p102, %p103
    %p105 = scmp.le.s32.totalorder 1, %s8
    %p106 = scmp.lt.s32.totalorder %s8, 5
    %p107 = pnand %p105, %p106
    %p108 = pneg %p107
    // Predicated region
    $region9: #{conv_bn_relu.2} parent=5 // pred_check
      _
    $region10: #{conv_bn_relu.2} parent=5 // pred_check_branch
      %110 = sbr.rel (%p107) target = $region12
    $region11: #{conv_bn_relu.2} parent=5 // pred_region
      %s111 = ssub.s32 %s8, 1
      // Predicated region
      $region13: #{conv_bn_relu.2} parent=11 // pred_check
        %p112 = pneg %p67
      $region14: #{conv_bn_relu.2} parent=11 // pred_check_branch
        %114 = sbr.rel (%p112) target = $region16
      $region15: #{conv_bn_relu.2} parent=11 // pred_region
        _
      $region16: #{conv_bn_relu.2} parent=11 // pred_fallthru
        _
    $region12: #{conv_bn_relu.2} parent=5 // pred_fallthru
      _
    %p115 = scmp.lt.s32.totalorder %s8, 4
    // Predicated region
    $region17: #{conv_bn_relu.2} parent=5 // pred_check
      %p116 = pneg %p115
    $region18: #{conv_bn_relu.2} parent=5 // pred_check_branch
      %118 = sbr.rel (%p116) target = $region20
    $region19: #{conv_bn_relu.2} parent=5 // pred_region
      // Predicated region
      $region21: #{conv_bn_relu.2} parent=19 // pred_check
        %p119 = pneg %p40
      $region22: #{conv_bn_relu.2} parent=19 // pred_check_branch
        %121 = sbr.rel (%p119) target = $region24
      $region23: #{conv_bn_relu.2} parent=19 // pred_region
        %p122 = scmp.lt.s32.totalorder %s15, 1
        %s123 = scalar_select %p122, %s15, 1
        %s124 = smul.addr %s123, 3
        %s125 = smul.addr %s124, 8
        %s126 = scalar_lea.vmem %s0, %s125
      $region24: #{conv_bn_relu.2} parent=19 // pred_fallthru
        _
    $region20: #{conv_bn_relu.2} parent=5 // pred_fallthru
      _
    %p127 = scmp.le.s32.totalorder 1, %s8
    %p128 = scmp.lt.s32.totalorder %s8, 5
    %p129 = pnand %p127, %p128
    %p130 = pneg %p129
    // Predicated region
    $region25: #{conv_bn_relu.2} parent=5 // pred_check
      _
    $region26: #{conv_bn_relu.2} parent=5 // pred_check_branch
      %132 = sbr.rel (%p129) target = $region28
    $region27: #{conv_bn_relu.2} parent=5 // pred_region
      %s133 = ssub.s32 %s8, 1
      %p134 = scmp.lt.s32.totalorder %s17, 1
      %s135 = scalar_select %p134, %s17, 1
      %s136 = smul.addr %s135, 3
      %s137 = smul.addr %s136, 8
      %s138 = scalar_lea.vmem %s0, %s137
      %p139 = pneg %p46
      %p140 = pneg %p43
      %p141 = pneg %p67
      %p142 = pneg %p64
      %p143 = pneg %p97
      %p144 = pneg %p94
      %s145 = smul.u32 %s17, 2
      %s146 = sadd.s32 %s145, %s18
      %p147 = scmp.lt.s32.totalorder %s146, 3
      %s148 = scalar_select %p147, %s146, 3
      %s149 = smul.addr %s148, 2
      %s150 = scalar_lea.vmem %s2, %s149
      %p151 = scmp.lt.s32.totalorder %s17, 1
      %s152 = scalar_select %p151, %s17, 1
      %s153 = smul.addr %s152, 3
      %s154 = smul.addr %s153, 8
      %s155 = scalar_lea.vmem %s0, %s154
      %s156 = smul.u32 %s17, 2
      %s157 = sadd.s32 %s156, %s18
      %p158 = scmp.lt.s32.totalorder %s157, 3
      %s159 = scalar_select %p158, %s157, 3
      %s160 = smul.addr %s159, 2
      %s161 = scalar_lea.vmem %s2, %s160
      %s162 = smul.u32 %s17, 2
      %s163 = sadd.s32 %s162, %s18
      %s164 = smul.u32 %s18, 8
      %s165 = scalar_lea.vmem %s155, %s164
      %v166 = vld [vmem:[%s165] sm:$0xff]
      %v167 = vld [vmem:[%s1] sm:$0xff]
      %v168 = vld [vmem:[%s1 + $0x8] sm:$0xff]
      %v169 = vld [vmem:[%s1 + $0x10] sm:$0xff]
      %v170 = vld [vmem:[%s1 + $0x18] sm:$0xff]
      %v171 = vld [vmem:[%s1 + $0x20] sm:$0xff]
      %v172 = vld [vmem:[%s1 + $0x28] sm:$0xff]
      %v173 = vld [vmem:[%s1 + $0x30] sm:$0xff]
      %v174 = vld [vmem:[%s1 + $0x38] sm:$0xff]
      %v175 = vld [vmem:[%s1 + $0x40] sm:$0xff]
      %s176 = sadd.s32 %s164, 1
      %s177 = scalar_lea.vmem %s155, %s176
      %v178 = vld [vmem:[%s177] sm:$0xff]
      %s179 = scalar_lea.vmem %s1, 72
      %v180 = vld [vmem:[%s179] sm:$0xff]
      %v181 = vld [vmem:[%s179 + $0x8] sm:$0xff]
      %v182 = vld [vmem:[%s179 + $0x10] sm:$0xff]
      %v183 = vld [vmem:[%s179 + $0x18] sm:$0xff]
      %v184 = vld [vmem:[%s179 + $0x20] sm:$0xff]
      %v185 = vld [vmem:[%s179 + $0x28] sm:$0xff]
      %v186 = vld [vmem:[%s179 + $0x30] sm:$0xff]
      %v187 = vld [vmem:[%s179 + $0x38] sm:$0xff]
      %v188 = vld [vmem:[%s179 + $0x40] sm:$0xff]
      %vm189 = vcmask 588800
      %v191 = vsel %vm189, %v178, 0
      %193 = vmatprep.subr.mxu0 0.0
      %194 = vmatpush1.msra.mxu0 0.0
      %195 = vmatprep.subr.mxu0 0.0
      %196 = vmatpush1.msra.mxu0 0.0
      %197 = vmatprep.subr.mxu0 0.0
      %198 = vmatpush1.msra.mxu0 0.0
      %199 = vmatprep.subr.mxu0 0.0
      %200 = vmatpush1.msra.mxu0 0.0
      %201 = vmatprep.subr.mxu0 0.0
      %202 = vmatpush1.msra.mxu0 0.0
      %203 = vmatprep.subr.mxu0 0.0
      %204 = vmatpush1.msra.mxu0 0.0
      %205 = vmatprep.subr.mxu0 0.0
      %206 = vmatpush1.msra.mxu0 0.0
      %207 = vmatprep.subr.mxu0 0.0
      %208 = vmatpush1.msra.mxu0 %v188
      %209 = vmatprep.subr.mxu0 0.0
      %210 = vmatpush1.msra.mxu0 %v187
      %211 = vmatprep.subr.mxu0 0.0
      %212 = vmatpush1.msra.mxu0 %v186
      %213 = vmatprep.subr.mxu0 0.0
      %214 = vmatpush1.msra.mxu0 %v185
      %215 = vmatprep.subr.mxu0 0.0
      %216 = vmatpush1.msra.mxu0 %v184
      %217 = vmatprep.subr.mxu0 0.0
      %218 = vmatpush1.msra.mxu0 %v183
      %219 = vmatprep.subr.mxu0 0.0
      %220 = vmatpush1.msra.mxu0 %v182
      %221 = vmatprep.subr.mxu0 0.0
      %222 = vmatpush1.msra.mxu0 %v181
      %223 = vmatprep.subr.mxu0 0.0
      %224 = vmatpush1.msra.mxu0 %v180
      %225 = vmatprep.subr.mxu0 0.0
      %226 = vmatpush2.msra.mxu0 0.0
      %227 = vmatprep.subr.mxu0 0.0
      %228 = vmatpush2.msra.mxu0 0.0
      %229 = vmatprep.subr.mxu0 0.0
      %230 = vmatpush2.msra.mxu0 0.0
      %231 = vmatprep.subr.mxu0 0.0
      %232 = vmatpush2.msra.mxu0 0.0
      %233 = vmatprep.subr.mxu0 0.0
      %234 = vmatpush2.msra.mxu0 0.0
      %235 = vmatprep.subr.mxu0 0.0
      %236 = vmatpush2.msra.mxu0 0.0
      %237 = vmatprep.subr.mxu0 0.0
      %238 = vmatpush2.msra.mxu0 0.0
      %239 = vmatprep.subr.mxu0 0.0
      %240 = vmatpush2.msra.mxu0 0.0
      %241 = vmatprep.subr.mxu0 0.0
      %242 = vmatpush2.msra.mxu0 0.0
      %243 = vmatprep.subr.mxu0 0.0
      %244 = vmatpush2.msra.mxu0 0.0
      %245 = vmatprep.subr.mxu0 0.0
      %246 = vmatpush2.msra.mxu0 0.0
      %247 = vmatprep.subr.mxu0 0.0
      %248 = vmatpush2.msra.mxu0 0.0
      %249 = vmatprep.subr.mxu0 0.0
      %250 = vmatpush2.msra.mxu0 0.0
      %251 = vmatprep.subr.mxu0 0.0
      %252 = vmatpush2.msra.mxu0 0.0
      %253 = vmatprep.subr.mxu0 0.0
      %254 = vmatpush2.msra.mxu0 0.0
      %255 = vmatprep.subr.mxu0 0.0
      %256 = vmatpush2.msra.mxu0 0.0
      %257 = vmatprep.mubr.f32.mxu0 0.0
      %258 = vmatmul.mubr.f32.gmra.mxu0 %v191
      %v259 = vpop.f32.mrf.mxu0
      %v260 = vadd.f32 0.0, %v259
      %v261 = vpop.f32.mrf.mxu0
      %262 = vdwg.mxu0
      %v264 = vsel %vm189, %v166, 0
      %266 = vmatprep.subr.mxu0 0.0
      %267 = vmatpush1.msra.mxu0 0.0
      %268 = vmatprep.subr.mxu0 0.0
      %269 = vmatpush1.msra.mxu0 0.0
      %270 = vmatprep.subr.mxu0 0.0
      %271 = vmatpush1.msra.mxu0 0.0
      %272 = vmatprep.subr.mxu0 0.0
      %273 = vmatpush1.msra.mxu0 0.0
      %274 = vmatprep.subr.mxu0 0.0
      %275 = vmatpush1.msra.mxu0 0.0
      %276 = vmatprep.subr.mxu0 0.0
      %277 = vmatpush1.msra.mxu0 0.0
      %278 = vmatprep.subr.mxu0 0.0
      %279 = vmatpush1.msra.mxu0 0.0
      %280 = vmatprep.subr.mxu0 0.0
      %281 = vmatpush1.msra.mxu0 %v175
      %282 = vmatprep.subr.mxu0 0.0
      %283 = vmatpush1.msra.mxu0 %v174
      %284 = vmatprep.subr.mxu0 0.0
      %285 = vmatpush1.msra.mxu0 %v173
      %286 = vmatprep.subr.mxu0 0.0
      %287 = vmatpush1.msra.mxu0 %v172
      %288 = vmatprep.subr.mxu0 0.0
      %289 = vmatpush1.msra.mxu0 %v171
      %290 = vmatprep.subr.mxu0 0.0
      %291 = vmatpush1.msra.mxu0 %v170
      %292 = vmatprep.subr.mxu0 0.0
      %293 = vmatpush1.msra.mxu0 %v169
      %294 = vmatprep.subr.mxu0 0.0
      %295 = vmatpush1.msra.mxu0 %v168
      %296 = vmatprep.subr.mxu0 0.0
      %297 = vmatpush1.msra.mxu0 %v167
      %298 = vmatprep.subr.mxu0 0.0
      %299 = vmatpush2.msra.mxu0 0.0
      %300 = vmatprep.subr.mxu0 0.0
      %301 = vmatpush2.msra.mxu0 0.0
      %302 = vmatprep.subr.mxu0 0.0
      %303 = vmatpush2.msra.mxu0 0.0
      %304 = vmatprep.subr.mxu0 0.0
      %305 = vmatpush2.msra.mxu0 0.0
      %306 = vmatprep.subr.mxu0 0.0
      %307 = vmatpush2.msra.mxu0 0.0
      %308 = vmatprep.subr.mxu0 0.0
      %309 = vmatpush2.msra.mxu0 0.0
      %310 = vmatprep.subr.mxu0 0.0
      %311 = vmatpush2.msra.mxu0 0.0
      %312 = vmatprep.subr.mxu0 0.0
      %313 = vmatpush2.msra.mxu0 0.0
      %314 = vmatprep.subr.mxu0 0.0
      %315 = vmatpush2.msra.mxu0 0.0
      %316 = vmatprep.subr.mxu0 0.0
      %317 = vmatpush2.msra.mxu0 0.0
      %318 = vmatprep.subr.mxu0 0.0
      %319 = vmatpush2.msra.mxu0 0.0
      %320 = vmatprep.subr.mxu0 0.0
      %321 = vmatpush2.msra.mxu0 0.0
      %322 = vmatprep.subr.mxu0 0.0
      %323 = vmatpush2.msra.mxu0 0.0
      %324 = vmatprep.subr.mxu0 0.0
      %325 = vmatpush2.msra.mxu0 0.0
      %326 = vmatprep.subr.mxu0 0.0
      %327 = vmatpush2.msra.mxu0 0.0
      %328 = vmatprep.subr.mxu0 0.0
      %329 = vmatpush2.msra.mxu0 0.0
      %330 = vmatprep.mubr.f32.mxu0 0.0
      %331 = vmatmul.mubr.f32.gmra.mxu0 %v264
      %v332 = vpop.f32.mrf.mxu0
      %v333 = vadd.f32 %v260, %v332
      %v334 = vpop.f32.mrf.mxu0
      %335 = vdwg.mxu0
      %s336 = sadd.s32 %s164, 2
      %s337 = scalar_lea.vmem %s155, %s336
      %v338 = vld [vmem:[%s337] sm:$0xff]
      %s339 = scalar_lea.vmem %s1, 144
      %v340 = vld [vmem:[%s339] sm:$0xff]
      %v341 = vld [vmem:[%s339 + $0x8] sm:$0xff]
      %v342 = vld [vmem:[%s339 + $0x10] sm:$0xff]
      %v343 = vld [vmem:[%s339 + $0x18] sm:$0xff]
      %v344 = vld [vmem:[%s339 + $0x20] sm:$0xff]
      %v345 = vld [vmem:[%s339 + $0x28] sm:$0xff]
      %v346 = vld [vmem:[%s339 + $0x30] sm:$0xff]
      %v347 = vld [vmem:[%s339 + $0x38] sm:$0xff]
      %v348 = vld [vmem:[%s339 + $0x40] sm:$0xff]
      %v350 = vsel %vm189, %v338, 0
      %352 = vmatprep.subr.mxu0 0.0
      %353 = vmatpush1.msra.mxu0 0.0
      %354 = vmatprep.subr.mxu0 0.0
      %355 = vmatpush1.msra.mxu0 0.0
      %356 = vmatprep.subr.mxu0 0.0
      %357 = vmatpush1.msra.mxu0 0.0
      %358 = vmatprep.subr.mxu0 0.0
      %359 = vmatpush1.msra.mxu0 0.0
      %360 = vmatprep.subr.mxu0 0.0
      %361 = vmatpush1.msra.mxu0 0.0
      %362 = vmatprep.subr.mxu0 0.0
      %363 = vmatpush1.msra.mxu0 0.0
      %364 = vmatprep.subr.mxu0 0.0
      %365 = vmatpush1.msra.mxu0 0.0
      %366 = vmatprep.subr.mxu0 0.0
      %367 = vmatpush1.msra.mxu0 %v348
      %368 = vmatprep.subr.mxu0 0.0
      %369 = vmatpush1.msra.mxu0 %v347
      %370 = vmatprep.subr.mxu0 0.0
      %371 = vmatpush1.msra.mxu0 %v346
      %372 = vmatprep.subr.mxu0 0.0
      %373 = vmatpush1.msra.mxu0 %v345
      %374 = vmatprep.subr.mxu0 0.0
      %375 = vmatpush1.msra.mxu0 %v344
      %376 = vmatprep.subr.mxu0 0.0
      %377 = vmatpush1.msra.mxu0 %v343
      %378 = vmatprep.subr.mxu0 0.0
      %379 = vmatpush1.msra.mxu0 %v342
      %380 = vmatprep.subr.mxu0 0.0
      %381 = vmatpush1.msra.mxu0 %v341
      %382 = vmatprep.subr.mxu0 0.0
      %383 = vmatpush1.msra.mxu0 %v340
      %384 = vmatprep.subr.mxu0 0.0
      %385 = vmatpush2.msra.mxu0 0.0
      %386 = vmatprep.subr.mxu0 0.0
      %387 = vmatpush2.msra.mxu0 0.0
      %388 = vmatprep.subr.mxu0 0.0
      %389 = vmatpush2.msra.mxu0 0.0
      %390 = vmatprep.subr.mxu0 0.0
      %391 = vmatpush2.msra.mxu0 0.0
      %392 = vmatprep.subr.mxu0 0.0
      %393 = vmatpush2.msra.mxu0 0.0
      %394 = vmatprep.subr.mxu0 0.0
      %395 = vmatpush2.msra.mxu0 0.0
      %396 = vmatprep.subr.mxu0 0.0
      %397 = vmatpush2.msra.mxu0 0.0
      %398 = vmatprep.subr.mxu0 0.0
      %399 = vmatpush2.msra.mxu0 0.0
      %400 = vmatprep.subr.mxu0 0.0
      %401 = vmatpush2.msra.mxu0 0.0
      %402 = vmatprep.subr.mxu0 0.0
      %403 = vmatpush2.msra.mxu0 0.0
      %404 = vmatprep.subr.mxu0 0.0
      %405 = vmatpush2.msra.mxu0 0.0
      %406 = vmatprep.subr.mxu0 0.0
      %407 = vmatpush2.msra.mxu0 0.0
      %408 = vmatprep.subr.mxu0 0.0
      %409 = vmatpush2.msra.mxu0 0.0
      %410 = vmatprep.subr.mxu0 0.0
      %411 = vmatpush2.msra.mxu0 0.0
      %412 = vmatprep.subr.mxu0 0.0
      %413 = vmatpush2.msra.mxu0 0.0
      %414 = vmatprep.subr.mxu0 0.0
      %415 = vmatpush2.msra.mxu0 0.0
      %416 = vmatprep.mubr.f32.mxu0 0.0
      %417 = vmatmul.mubr.f32.gmra.mxu0 %v350
      %v418 = vpop.f32.mrf.mxu0
      %v419 = vadd.f32 0.0, %v418
      %v420 = vpop.f32.mrf.mxu0
      %421 = vdwg.mxu0
      %v422 = vadd.f32 %v333, %v419
      %v423 = vrot.slane %v422, 4
      %v424 = vadd.f32 %v422, %v423
      %v425 = vrot.slane %v424, 2
      %v426 = vadd.f32 %v424, %v425
      %v427 = vrot.slane %v426, 1
      %v428 = vadd.f32 %v426, %v427
      %v429 = vmul.f32 %v422, %v422
      %v430 = vrot.slane %v429, 4
      %v431 = vadd.f32 %v429, %v430
      %v432 = vrot.slane %v431, 2
      %v433 = vadd.f32 %v431, %v432
      %v434 = vrot.slane %v433, 1
      %v435 = vadd.f32 %v433, %v434
      %v436 = vadd.f32 %v428, 0.0
      %v437 = vadd.f32 %v435, 0.0
      %439 = vrot.lane.b32.xlu0 %v428, 120
      %v440 = vpop.permute.xlu0 %439
      %v442 = vadd.f32 %v436, %v440
      %444 = vrot.lane.b32.xlu0 %v435, 120
      %v445 = vpop.permute.xlu0 %444
      %v447 = vadd.f32 %v437, %v445
      %448 = vrot.lane.b32.xlu0 %v428, 112
      %v449 = vpop.permute.xlu0 %448
      %v451 = vadd.f32 %v442, %v449
      %452 = vrot.lane.b32.xlu0 %v435, 112
      %v453 = vpop.permute.xlu0 %452
      %v455 = vadd.f32 %v447, %v453
      %456 = vrot.lane.b32.xlu0 %v428, 104
      %v457 = vpop.permute.xlu0 %456
      %v459 = vadd.f32 %v451, %v457
      %460 = vrot.lane.b32.xlu0 %v435, 104
      %v461 = vpop.permute.xlu0 %460
      %v463 = vadd.f32 %v455, %v461
      %464 = vrot.lane.b32.xlu0 %v428, 96
      %v465 = vpop.permute.xlu0 %464
      %v467 = vadd.f32 %v459, %v465
      %468 = vrot.lane.b32.xlu0 %v435, 96
      %v469 = vpop.permute.xlu0 %468
      %v471 = vadd.f32 %v463, %v469
      %472 = vrot.lane.b32.xlu0 %v428, 88
      %v473 = vpop.permute.xlu0 %472
      %v475 = vadd.f32 %v467, %v473
      %476 = vrot.lane.b32.xlu0 %v435, 88
      %v477 = vpop.permute.xlu0 %476
      %v479 = vadd.f32 %v471, %v477
      %480 = vrot.lane.b32.xlu0 %v428, 80
      %v481 = vpop.permute.xlu0 %480
      %v483 = vadd.f32 %v475, %v481
      %484 = vrot.lane.b32.xlu0 %v435, 80
      %v485 = vpop.permute.xlu0 %484
      %v487 = vadd.f32 %v479, %v485
      %488 = vrot.lane.b32.xlu0 %v428, 72
      %v489 = vpop.permute.xlu0 %488
      %v491 = vadd.f32 %v483, %v489
      %492 = vrot.lane.b32.xlu0 %v435, 72
      %v493 = vpop.permute.xlu0 %492
      %v495 = vadd.f32 %v487, %v493
      %496 = vrot.lane.b32.xlu0 %v428, 64
      %v497 = vpop.permute.xlu0 %496
      %v499 = vadd.f32 %v491, %v497
      %500 = vrot.lane.b32.xlu0 %v435, 64
      %v501 = vpop.permute.xlu0 %500
      %v503 = vadd.f32 %v495, %v501
      %504 = vrot.lane.b32.xlu0 %v428, 56
      %v505 = vpop.permute.xlu0 %504
      %v507 = vadd.f32 %v499, %v505
      %508 = vrot.lane.b32.xlu0 %v435, 56
      %v509 = vpop.permute.xlu0 %508
      %v511 = vadd.f32 %v503, %v509
      %512 = vrot.lane.b32.xlu0 %v428, 48
      %v513 = vpop.permute.xlu0 %512
      %v515 = vadd.f32 %v507, %v513
      %516 = vrot.lane.b32.xlu0 %v435, 48
      %v517 = vpop.permute.xlu0 %516
      %v519 = vadd.f32 %v511, %v517
      %520 = vrot.lane.b32.xlu0 %v428, 40
      %v521 = vpop.permute.xlu0 %520
      %v523 = vadd.f32 %v515, %v521
      %524 = vrot.lane.b32.xlu0 %v435, 40
      %v525 = vpop.permute.xlu0 %524
      %v527 = vadd.f32 %v519, %v525
      %528 = vrot.lane.b32.xlu0 %v428, 32
      %v529 = vpop.permute.xlu0 %528
      %v531 = vadd.f32 %v523, %v529
      %532 = vrot.lane.b32.xlu0 %v435, 32
      %v533 = vpop.permute.xlu0 %532
      %v535 = vadd.f32 %v527, %v533
      %536 = vrot.lane.b32.xlu0 %v428, 24
      %v537 = vpop.permute.xlu0 %536
      %v539 = vadd.f32 %v531, %v537
      %540 = vrot.lane.b32.xlu0 %v435, 24
      %v541 = vpop.permute.xlu0 %540
      %v543 = vadd.f32 %v535, %v541
      %544 = vrot.lane.b32.xlu0 %v428, 16
      %v545 = vpop.permute.xlu0 %544
      %v547 = vadd.f32 %v539, %v545
      %548 = vrot.lane.b32.xlu0 %v435, 16
      %v549 = vpop.permute.xlu0 %548
      %v551 = vadd.f32 %v543, %v549
      %552 = vrot.lane.b32.xlu0 %v428, 8
      %v553 = vpop.permute.xlu0 %552
      %v555 = vadd.f32 %v547, %v553
      %556 = vrot.lane.b32.xlu0 %v435, 8
      %v557 = vpop.permute.xlu0 %556
      %v559 = vadd.f32 %v551, %v557
      %vm560 = vcmask 57344
      %561 = vst.msk [vmem:[%s161] sm:$0x1] %vm560, %v555
      %562 = vst.msk [vmem:[%s161 + $0x1] sm:$0x1] %vm560, %v559
      %s563 = smul.u32 %s17, 2
      %s564 = sadd.s32 %s563, %s18
      %p565 = scmp.lt.s32.totalorder %s564, 3
      %s566 = scalar_select %p565, %s564, 3
      %s567 = smul.addr %s566, 2
      %s568 = scalar_lea.vmem %s2, %s567
      // Predicated region
      $region29: #{conv_bn_relu.2} parent=27 // pred_check
        %p569 = pneg %p94
      $region30: #{conv_bn_relu.2} parent=27 // pred_check_branch
        %571 = sbr.rel (%p569) target = $region32
      $region31: #{conv_bn_relu.2} parent=27 // pred_region
        %s572 = smul.u32 %s17, 2
        %s573 = sadd.s32 %s572, %s18
      $region32: #{conv_bn_relu.2} parent=27 // pred_fallthru
        _
    $region28: #{conv_bn_relu.2} parent=5 // pred_fallthru
      _
    %p574 = scmp.le.s32.totalorder 2, %s8
    // Predicated region
    $region33: #{conv_bn_relu.2} parent=5 // pred_check
      %p575 = pneg %p574
    $region34: #{conv_bn_relu.2} parent=5 // pred_check_branch
      %577 = sbr.rel (%p575) target = $region36
    $region35: #{conv_bn_relu.2} parent=5 // pred_region
      %s578 = ssub.s32 %s8, 2
      // Predicated region
      $region37: #{conv_bn_relu.2} parent=35 // pred_check
        %p579 = pneg %p100
      $region38: #{conv_bn_relu.2} parent=35 // pred_check_branch
        %581 = sbr.rel (%p579) target = $region40
      $region39: #{conv_bn_relu.2} parent=35 // pred_region
        %s582 = smul.u32 %s19, 2
        %s583 = sadd.s32 %s582, %s20
        %p584 = scmp.lt.s32.totalorder %s583, 3
        %s585 = scalar_select %p584, %s583, 3
        %s586 = smul.addr %s585, 2
        %s587 = scalar_lea.vmem %s2, %s586
      $region40: #{conv_bn_relu.2} parent=35 // pred_fallthru
        _
    $region36: #{conv_bn_relu.2} parent=5 // pred_fallthru
      _
  $region6: #{conv_bn_relu.2} parent=0 // loop_footer
    %s12 = sadd.s32 1, %s8
  $region7: #{conv_bn_relu.2} parent=0 // loop_footer_branch
    %7 = sbr.rel target = $region3
  $region8: #{conv_bn_relu.2} parent=0 // loop_exit
    _

// kernel: conv_bn_relu.3
$region0: #{conv_bn_relu.3}
  #allocation0 [shape = 'u32[]', space=smem, size = 0x4, offset = 0x4, fixed_abs, tag = 'smem constant byte address 0x4 - core index']
  #allocation1 [shape = 'u32[144,128]{1,0:T(1,128)}', space=vmem, size = 0x12000, scoped, tag = 'internal scratch']
  %s0 = inlined_call_operand.vmem [shape: f32[2,18,72], index: 0, kind: input, shape index: {}]
  %s1 = inlined_call_operand.vmem [shape: f32[3,72,128], index: 1, kind: input, shape index: {}]
  %s2 = inlined_call_operand.vmem [shape: f32[4,2,8], index: 2, kind: input, shape index: {}]
  %s3 = inlined_call_operand.vmem [shape: f32[1,8], index: 3, kind: input, shape index: {}]
  %s4 = inlined_call_operand.vmem [shape: f32[1,8], index: 4, kind: input, shape index: {}]
  %s5 = inlined_call_operand.vmem [shape: f32[2,16,128], index: 5, kind: output, shape index: {}]
  %s6 = sld [smem:[#allocation0]]
  $region53: #{conv_bn_relu.3} parent=0
    _
  %s8 = ssub.s32 1, %s6
  %s9 = scalar_select 0, %s8, %s6
  loop: start=0, step=1, limit=6
  $region2: #{conv_bn_relu.3} parent=0 // loop_pre_header
    _
  $region3: #{conv_bn_relu.3} parent=0 // loop_header
    %s11 = sphi 0, %s15
    %p12 = scmp.ge.s32.totalorder %s11, 6
    %s18 = sphi 0, %s30
    %s19 = sphi 0, %s26
    %s20 = sphi 0, %s18
    %s21 = sphi 0, %s19
    %s22 = sphi 0, %s20
    %s23 = sphi 0, %s21
    %s33 = sphi 0, %s35
    %s36 = sphi 0, %s33
    %s37 = sphi 0, %s36
    %s53 = sphi 0, %s37
    %s57 = sphi 0, %s57
    %s59 = sphi 0, %s57
    %s60 = sphi 0, %s59
    %s74 = sphi 0, %s60
    %s78 = sphi 0, %s78
    %s80 = sphi 0, %s78
    %s81 = sphi 0, %s80
    %s95 = sphi 0, %s81
    %s99 = sphi 0, %s99
    %s101 = sphi 0, %s99
    %s102 = sphi 0, %s101
    %s116 = sphi 0, %s102
    %s120 = sphi 0, %s120
    %s122 = sphi 0, %s120
    %s123 = sphi 0, %s122
    %s137 = sphi 0, %s123
    %s145 = sphi 0, %s147
    %s148 = sphi 0, %s145
    %s149 = sphi 0, %s148
    %s165 = sphi 0, %s149
  $region4: #{conv_bn_relu.3} parent=0 // loop_header_branch
    %14 = sbr.rel (%p12) target = $region8
  $region5: #{conv_bn_relu.3} parent=0 // loop_body
    %s16 = ssub.s32 %s11, 1
    %s17 = ssub.s32 %s11, 2
    %s24 = sadd.s32 1, %s19
    %p25 = scmp.ge.s32.totalorder %s24, 2
    %s26 = scalar_select %p25, 0, %s24
    %s27 = sadd.s32 1, %s18
    %s28 = scalar_select %p25, %s27, %s18
    %p29 = scmp.ge.s32.totalorder %s28, 2
    %s30 = scalar_select %p29, 0, %s28
    %s31 = ssub.s32 %s18, %s30
    %p32 = scmp.eq.s32.totalorder %s31, 0
    %s34 = sadd.s32 %s33, 1
    %s35 = scalar_select %p32, %s33, %s34
    %p38 = pneg %p32
    %p39 = scmp.eq.s32.totalorder %s11, 3
    %p40 = por %p38, %p39
    %p41 = scmp.ne.s32.totalorder %s33, %s36
    %p42 = scmp.eq.s32.totalorder %s11, 0
    %p43 = por %p41, %p42
    %p44 = scmp.ne.s32.totalorder %s33, %s36
    %p45 = scmp.eq.s32.totalorder %s16, 3
    %p46 = por %p44, %p45
    %p47 = scmp.ne.s32.totalorder %s36, %s37
    %p48 = scmp.eq.s32.totalorder %s16, 0
    %p49 = por %p47, %p48
    %p50 = scmp.ne.s32.totalorder %s36, %s37
    %p51 = scmp.eq.s32.totalorder %s17, 3
    %p52 = por %p50, %p51
    %p54 = scmp.ne.s32.totalorder %s37, %s53
    %p55 = scmp.eq.s32.totalorder %s17, 0
    %p56 = por %p54, %p55
    %s58 = sadd.s32 %s57, 1
    %p61 = scmp.eq.s32.totalorder %s11, 3
    %p62 = scmp.ne.s32.totalorder %s57, %s59
    %p63 = scmp.eq.s32.totalorder %s11, 0
    %p64 = por %p62, %p63
    %p65 = scmp.ne.s32.totalorder %s57, %s59
    %p66 = scmp.eq.s32.totalorder %s16, 3
    %p67 = por %p65, %p66
    %p68 = scmp.ne.s32.totalorder %s59, %s60
    %p69 = scmp.eq.s32.totalorder %s16, 0
    %p70 = por %p68, %p69
    %p71 = scmp.ne.s32.totalorder %s59, %s60
    %p72 = scmp.eq.s32.totalorder %s17, 3
    %p73 = por %p71, %p72
    %p75 = scmp.ne.s32.totalorder %s60, %s74
    %p76 = scmp.eq.s32.totalorder %s17, 0
    %p77 = por %p75, %p76
    %s79 = sadd.s32 %s78, 1
    %p82 = scmp.eq.s32.totalorder %s11, 3
    %p83 = scmp.ne.s32.totalorder %s78, %s80
    %p84 = scmp.eq.s32.totalorder %s11, 0
    %p85 = por %p83, %p84
    %p86 = scmp.ne.s32.totalorder %s78, %s80
    %p87 = scmp.eq.s32.totalorder %s16, 3
    %p88 = por %p86, %p87
    %p89 = scmp.ne.s32.totalorder %s80, %s81
    %p90 = scmp.eq.s32.totalorder %s16, 0
    %p91 = por %p89, %p90
    %p92 = scmp.ne.s32.totalorder %s80, %s81
    %p93 = scmp.eq.s32.totalorder %s17, 3
    %p94 = por %p92, %p93
    %p96 = scmp.ne.s32.totalorder %s81, %s95
    %p97 = scmp.eq.s32.totalorder %s17, 0
    %p98 = por %p96, %p97
    %s100 = sadd.s32 %s99, 1
    %p103 = scmp.eq.s32.totalorder %s11, 3
    %p104 = scmp.ne.s32.totalorder %s99, %s101
    %p105 = scmp.eq.s32.totalorder %s11, 0
    %p106 = por %p104, %p105
    %p107 = scmp.ne.s32.totalorder %s99, %s101
    %p108 = scmp.eq.s32.totalorder %s16, 3
    %p109 = por %p107, %p108
    %p110 = scmp.ne.s32.totalorder %s101, %s102
    %p111 = scmp.eq.s32.totalorder %s16, 0
    %p112 = por %p110, %p111
    %p113 = scmp.ne.s32.totalorder %s101, %s102
    %p114 = scmp.eq.s32.totalorder %s17, 3
    %p115 = por %p113, %p114
    %p117 = scmp.ne.s32.totalorder %s102, %s116
    %p118 = scmp.eq.s32.totalorder %s17, 0
    %p119 = por %p117, %p118
    %s121 = sadd.s32 %s120, 1
    %p124 = scmp.eq.s32.totalorder %s11, 3
    %p125 = scmp.ne.s32.totalorder %s120, %s122
    %p126 = scmp.eq.s32.totalorder %s11, 0
    %p127 = por %p125, %p126
    %p128 = scmp.ne.s32.totalorder %s120, %s122
    %p129 = scmp.eq.s32.totalorder %s16, 3
    %p130 = por %p128, %p129
    %p131 = scmp.ne.s32.totalorder %s122, %s123
    %p132 = scmp.eq.s32.totalorder %s16, 0
    %p133 = por %p131, %p132
    %p134 = scmp.ne.s32.totalorder %s122, %s123
    %p135 = scmp.eq.s32.totalorder %s17, 3
    %p136 = por %p134, %p135
    %p138 = scmp.ne.s32.totalorder %s123, %s137
    %p139 = scmp.eq.s32.totalorder %s17, 0
    %p140 = por %p138, %p139
    %s141 = ssub.s32 %s18, %s30
    %s142 = ssub.s32 %s19, %s26
    %s143 = sor.u32 %s141, %s142
    %p144 = scmp.eq.s32.totalorder %s143, 0
    %s146 = sadd.s32 %s145, 1
    %s147 = scalar_select %p144, %s145, %s146
    %p150 = pneg %p144
    %p151 = scmp.eq.s32.totalorder %s11, 3
    %p152 = por %p150, %p151
    %p153 = scmp.ne.s32.totalorder %s145, %s148
    %p154 = scmp.eq.s32.totalorder %s11, 0
    %p155 = por %p153, %p154
    %p156 = scmp.ne.s32.totalorder %s145, %s148
    %p157 = scmp.eq.s32.totalorder %s16, 3
    %p158 = por %p156, %p157
    %p159 = scmp.ne.s32.totalorder %s148, %s149
    %p160 = scmp.eq.s32.totalorder %s16, 0
    %p161 = por %p159, %p160
    %p162 = scmp.ne.s32.totalorder %s148, %s149
    %p163 = scmp.eq.s32.totalorder %s17, 3
    %p164 = por %p162, %p163
    %p166 = scmp.ne.s32.totalorder %s149, %s165
    %p167 = scmp.eq.s32.totalorder %s17, 0
    %p168 = por %p166, %p167
    %p169 = scmp.le.s32.totalorder 1, %s11
    %p170 = scmp.lt.s32.totalorder %s11, 5
    %p171 = pnand %p169, %p170
    %p172 = pneg %p171
    // Predicated region
    $region9: #{conv_bn_relu.3} parent=5 // pred_check
      _
    $region10: #{conv_bn_relu.3} parent=5 // pred_check_branch
      %174 = sbr.rel (%p171) target = $region12
    $region11: #{conv_bn_relu.3} parent=5 // pred_region
      %s175 = ssub.s32 %s11, 1
      // Predicated region
      $region13: #{conv_bn_relu.3} parent=11 // pred_check
        %p176 = pneg %p70
      $region14: #{conv_bn_relu.3} parent=11 // pred_check_branch
        %178 = sbr.rel (%p176) target = $region16
      $region15: #{conv_bn_relu.3} parent=11 // pred_region
        _
      $region16: #{conv_bn_relu.3} parent=11 // pred_fallthru
        _
      // Predicated region
      $region17: #{conv_bn_relu.3} parent=11 // pred_check
        %p179 = pneg %p91
      $region18: #{conv_bn_relu.3} parent=11 // pred_check_branch
        %181 = sbr.rel (%p179) target = $region20
      $region19: #{conv_bn_relu.3} parent=11 // pred_region
        _
      $region20: #{conv_bn_relu.3} parent=11 // pred_fallthru
        _
      // Predicated region
      $region21: #{conv_bn_relu.3} parent=11 // pred_check
        %p182 = pneg %p112
      $region22: #{conv_bn_relu.3} parent=11 // pred_check_branch
        %184 = sbr.rel (%p182) target = $region24
      $region23: #{conv_bn_relu.3} parent=11 // pred_region
        _
      $region24: #{conv_bn_relu.3} parent=11 // pred_fallthru
        _
      // Predicated region
      $region25: #{conv_bn_relu.3} parent=11 // pred_check
        %p185 = pneg %p133
      $region26: #{conv_bn_relu.3} parent=11 // pred_check_branch
        %187 = sbr.rel (%p185) target = $region28
      $region27: #{conv_bn_relu.3} parent=11 // pred_region
        _
      $region28: #{conv_bn_relu.3} parent=11 // pred_fallthru
        _
    $region12: #{conv_bn_relu.3} parent=5 // pred_fallthru
      _
    %p188 = scmp.lt.s32.totalorder %s11, 4
    // Predicated region
    $region29: #{conv_bn_relu.3} parent=5 // pred_check
      %p189 = pneg %p188
    $region30: #{conv_bn_relu.3} parent=5 // pred_check_branch
      %191 = sbr.rel (%p189) target = $region32
    $region31: #{conv_bn_relu.3} parent=5 // pred_region
      // Predicated region
      $region33: #{conv_bn_relu.3} parent=31 // pred_check
        %p192 = pneg %p43
      $region34: #{conv_bn_relu.3} parent=31 // pred_check_branch
        %194 = sbr.rel (%p192) target = $region36
      $region35: #{conv_bn_relu.3} parent=31 // pred_region
        %p195 = scmp.lt.s32.totalorder %s18, 1
        %s196 = scalar_select %p195, %s18, 1
        %s197 = smul.addr %s196, 3
        %s198 = smul.addr %s197, 8
        %s199 = scalar_lea.vmem %s0, %s198
      $region36: #{conv_bn_relu.3} parent=31 // pred_fallthru
        _
    $region32: #{conv_bn_relu.3} parent=5 // pred_fallthru
      _
    %p200 = scmp.le.s32.totalorder 1, %s11
    %p201 = scmp.lt.s32.totalorder %s11, 5
    %p202 = pnand %p200, %p201
    %p203 = pneg %p202
    // Predicated region
    $region37: #{conv_bn_relu.3} parent=5 // pred_check
      _
    $region38: #{conv_bn_relu.3} parent=5 // pred_check_branch
      %205 = sbr.rel (%p202) target = $region40
    $region39: #{conv_bn_relu.3} parent=5 // pred_region
      %s206 = ssub.s32 %s11, 1
      %p207 = scmp.lt.s32.totalorder %s20, 1
      %s208 = scalar_select %p207, %s20, 1
      %s209 = smul.addr %s208, 3
      %s210 = smul.addr %s209, 8
      %s211 = scalar_lea.vmem %s0, %s210
      %p212 = pneg %p49
      %p213 = pneg %p46
      %p214 = pneg %p70
      %p215 = pneg %p67
      %p216 = pneg %p91
      %p217 = pneg %p88
      %p218 = pneg %p112
      %p219 = pneg %p109
      %p220 = pneg %p133
      %p221 = pneg %p130
      %p222 = pneg %p161
      %p223 = pneg %p158
      %p224 = scmp.lt.s32.totalorder %s20, 1
      %s225 = scalar_select %p224, %s20, 1
      %p226 = scmp.lt.s32.totalorder %s21, 1
      %s227 = scalar_select %p226, %s21, 1
      %s228 = smul.addr %s225, 2
      %s229 = sadd.s32 %s227, %s228
      %s230 = smul.addr %s229, 8
      %s231 = scalar_lea.vmem %s5, %s230
      %p232 = scmp.lt.s32.totalorder %s20, 1
      %s233 = scalar_select %p232, %s20, 1
      %s234 = smul.addr %s233, 3
      %s235 = smul.addr %s234, 8
      %s236 = scalar_lea.vmem %s0, %s235
      %p237 = scmp.lt.s32.totalorder %s20, 1
      %s238 = scalar_select %p237, %s20, 1
      %p239 = scmp.lt.s32.totalorder %s21, 1
      %s240 = scalar_select %p239, %s21, 1
      %s241 = smul.addr %s238, 2
      %s242 = sadd.s32 %s240, %s241
      %s243 = smul.addr %s242, 8
      %s244 = scalar_lea.vmem %s5, %s243
      %s245 = smul.u32 %s21, 8
      %s246 = scalar_lea.vmem %s236, %s245
      %v247 = vld [vmem:[%s246] sm:$0xff]
      %v248 = vld [vmem:[%s1] sm:$0xff]
      %v249 = vld [vmem:[%s1 + $0x8] sm:$0xff]
      %v250 = vld [vmem:[%s1 + $0x10] sm:$0xff]
      %v251 = vld [vmem:[%s1 + $0x18] sm:$0xff]
      %v252 = vld [vmem:[%s1 + $0x20] sm:$0xff]
      %v253 = vld [vmem:[%s1 + $0x28] sm:$0xff]
      %v254 = vld [vmem:[%s1 + $0x30] sm:$0xff]
      %v255 = vld [vmem:[%s1 + $0x38] sm:$0xff]
      %v256 = vld [vmem:[%s1 + $0x40] sm:$0xff]
      %s257 = sadd.s32 %s245, 1
      %s258 = scalar_lea.vmem %s236, %s257
      %v259 = vld [vmem:[%s258] sm:$0xff]
      %s260 = scalar_lea.vmem %s1, 72
      %v261 = vld [vmem:[%s260] sm:$0xff]
      %v262 = vld [vmem:[%s260 + $0x8] sm:$0xff]
      %v263 = vld [vmem:[%s260 + $0x10] sm:$0xff]
      %v264 = vld [vmem:[%s260 + $0x18] sm:$0xff]
      %v265 = vld [vmem:[%s260 + $0x20] sm:$0xff]
      %v266 = vld [vmem:[%s260 + $0x28] sm:$0xff]
      %v267 = vld [vmem:[%s260 + $0x30] sm:$0xff]
      %v268 = vld [vmem:[%s260 + $0x38] sm:$0xff]
      %v269 = vld [vmem:[%s260 + $0x40] sm:$0xff]
      %vm270 = vcmask 588800
      %v272 = vsel %vm270, %v259, 0
      %274 = vmatprep.subr.mxu0 0.0
      %275 = vmatpush1.msra.mxu0 0.0
      %276 = vmatprep.subr.mxu0 0.0
      %277 = vmatpush1.msra.mxu0 0.0
      %278 = vmatprep.subr.mxu0 0.0
      %279 = vmatpush1.msra.mxu0 0.0
      %280 = vmatprep.subr.mxu0 0.0
      %281 = vmatpush1.msra.mxu0 0.0
      %282 = vmatprep.subr.mxu0 0.0
      %283 = vmatpush1.msra.mxu0 0.0
      %284 = vmatprep.subr.mxu0 0.0
      %285 = vmatpush1.msra.mxu0 0.0
      %286 = vmatprep.subr.mxu0 0.0
      %287 = vmatpush1.msra.mxu0 0.0
      %288 = vmatprep.subr.mxu0 0.0
      %289 = vmatpush1.msra.mxu0 %v269
      %290 = vmatprep.subr.mxu0 0.0
      %291 = vmatpush1.msra.mxu0 %v268
      %292 = vmatprep.subr.mxu0 0.0
      %293 = vmatpush1.msra.mxu0 %v267
      %294 = vmatprep.subr.mxu0 0.0
      %295 = vmatpush1.msra.mxu0 %v266
      %296 = vmatprep.subr.mxu0 0.0
      %297 = vmatpush1.msra.mxu0 %v265
      %298 = vmatprep.subr.mxu0 0.0
      %299 = vmatpush1.msra.mxu0 %v264
      %300 = vmatprep.subr.mxu0 0.0
      %301 = vmatpush1.msra.mxu0 %v263
      %302 = vmatprep.subr.mxu0 0.0
      %303 = vmatpush1.msra.mxu0 %v262
      %304 = vmatprep.subr.mxu0 0.0
      %305 = vmatpush1.msra.mxu0 %v261
      %306 = vmatprep.subr.mxu0 0.0
      %307 = vmatpush2.msra.mxu0 0.0
      %308 = vmatprep.subr.mxu0 0.0
      %309 = vmatpush2.msra.mxu0 0.0
      %310 = vmatprep.subr.mxu0 0.0
      %311 = vmatpush2.msra.mxu0 0.0
      %312 = vmatprep.subr.mxu0 0.0
      %313 = vmatpush2.msra.mxu0 0.0
      %314 = vmatprep.subr.mxu0 0.0
      %315 = vmatpush2.msra.mxu0 0.0
      %316 = vmatprep.subr.mxu0 0.0
      %317 = vmatpush2.msra.mxu0 0.0
      %318 = vmatprep.subr.mxu0 0.0
      %319 = vmatpush2.msra.mxu0 0.0
      %320 = vmatprep.subr.mxu0 0.0
      %321 = vmatpush2.msra.mxu0 0.0
      %322 = vmatprep.subr.mxu0 0.0
      %323 = vmatpush2.msra.mxu0 0.0
      %324 = vmatprep.subr.mxu0 0.0
      %325 = vmatpush2.msra.mxu0 0.0
      %326 = vmatprep.subr.mxu0 0.0
      %327 = vmatpush2.msra.mxu0 0.0
      %328 = vmatprep.subr.mxu0 0.0
      %329 = vmatpush2.msra.mxu0 0.0
      %330 = vmatprep.subr.mxu0 0.0
      %331 = vmatpush2.msra.mxu0 0.0
      %332 = vmatprep.subr.mxu0 0.0
      %333 = vmatpush2.msra.mxu0 0.0
      %334 = vmatprep.subr.mxu0 0.0
      %335 = vmatpush2.msra.mxu0 0.0
      %336 = vmatprep.subr.mxu0 0.0
      %337 = vmatpush2.msra.mxu0 0.0
      %338 = vmatprep.mubr.f32.mxu0 0.0
      %339 = vmatmul.mubr.f32.gmra.mxu0 %v272
      %v340 = vpop.f32.mrf.mxu0
      %v341 = vadd.f32 0.0, %v340
      %v342 = vpop.f32.mrf.mxu0
      %343 = vdwg.mxu0
      %v345 = vsel %vm270, %v247, 0
      %347 = vmatprep.subr.mxu0 0.0
      %348 = vmatpush1.msra.mxu0 0.0
      %349 = vmatprep.subr.mxu0 0.0
      %350 = vmatpush1.msra.mxu0 0.0
      %351 = vmatprep.subr.mxu0 0.0
      %352 = vmatpush1.msra.mxu0 0.0
      %353 = vmatprep.subr.mxu0 0.0
      %354 = vmatpush1.msra.mxu0 0.0
      %355 = vmatprep.subr.mxu0 0.0
      %356 = vmatpush1.msra.mxu0 0.0
      %357 = vmatprep.subr.mxu0 0.0
      %358 = vmatpush1.msra.mxu0 0.0
      %359 = vmatprep.subr.mxu0 0.0
      %360 = vmatpush1.msra.mxu0 0.0
      %361 = vmatprep.subr.mxu0 0.0
      %362 = vmatpush1.msra.mxu0 %v256
      %363 = vmatprep.subr.mxu0 0.0
      %364 = vmatpush1.msra.mxu0 %v255
      %365 = vmatprep.subr.mxu0 0.0
      %366 = vmatpush1.msra.mxu0 %v254
      %367 = vmatprep.subr.mxu0 0.0
      %368 = vmatpush1.msra.mxu0 %v253
      %369 = vmatprep.subr.mxu0 0.0
      %370 = vmatpush1.msra.mxu0 %v252
      %371 = vmatprep.subr.mxu0 0.0
      %372 = vmatpush1.msra.mxu0 %v251
      %373 = vmatprep.subr.mxu0 0.0
      %374 = vmatpush1.msra.mxu0 %v250
      %375 = vmatprep.subr.mxu0 0.0
      %376 = vmatpush1.msra.mxu0 %v249
      %377 = vmatprep.subr.mxu0 0.0
      %378 = vmatpush1.msra.mxu0 %v248
      %379 = vmatprep.subr.mxu0 0.0
      %380 = vmatpush2.msra.mxu0 0.0
      %381 = vmatprep.subr.mxu0 0.0
      %382 = vmatpush2.msra.mxu0 0.0
      %383 = vmatprep.subr.mxu0 0.0
      %384 = vmatpush2.msra.mxu0 0.0
      %385 = vmatprep.subr.mxu0 0.0
      %386 = vmatpush2.msra.mxu0 0.0
      %387 = vmatprep.subr.mxu0 0.0
      %388 = vmatpush2.msra.mxu0 0.0
      %389 = vmatprep.subr.mxu0 0.0
      %390 = vmatpush2.msra.mxu0 0.0
      %391 = vmatprep.subr.mxu0 0.0
      %392 = vmatpush2.msra.mxu0 0.0
      %393 = vmatprep.subr.mxu0 0.0
      %394 = vmatpush2.msra.mxu0 0.0
      %395 = vmatprep.subr.mxu0 0.0
      %396 = vmatpush2.msra.mxu0 0.0
      %397 = vmatprep.subr.mxu0 0.0
      %398 = vmatpush2.msra.mxu0 0.0
      %399 = vmatprep.subr.mxu0 0.0
      %400 = vmatpush2.msra.mxu0 0.0
      %401 = vmatprep.subr.mxu0 0.0
      %402 = vmatpush2.msra.mxu0 0.0
      %403 = vmatprep.subr.mxu0 0.0
      %404 = vmatpush2.msra.mxu0 0.0
      %405 = vmatprep.subr.mxu0 0.0
      %406 = vmatpush2.msra.mxu0 0.0
      %407 = vmatprep.subr.mxu0 0.0
      %408 = vmatpush2.msra.mxu0 0.0
      %409 = vmatprep.subr.mxu0 0.0
      %410 = vmatpush2.msra.mxu0 0.0
      %411 = vmatprep.mubr.f32.mxu0 0.0
      %412 = vmatmul.mubr.f32.gmra.mxu0 %v345
      %v413 = vpop.f32.mrf.mxu0
      %v414 = vadd.f32 %v341, %v413
      %v415 = vpop.f32.mrf.mxu0
      %416 = vdwg.mxu0
      %s417 = sadd.s32 %s245, 2
      %s418 = scalar_lea.vmem %s236, %s417
      %v419 = vld [vmem:[%s418] sm:$0xff]
      %s420 = scalar_lea.vmem %s1, 144
      %v421 = vld [vmem:[%s420] sm:$0xff]
      %v422 = vld [vmem:[%s420 + $0x8] sm:$0xff]
      %v423 = vld [vmem:[%s420 + $0x10] sm:$0xff]
      %v424 = vld [vmem:[%s420 + $0x18] sm:$0xff]
      %v425 = vld [vmem:[%s420 + $0x20] sm:$0xff]
      %v426 = vld [vmem:[%s420 + $0x28] sm:$0xff]
      %v427 = vld [vmem:[%s420 + $0x30] sm:$0xff]
      %v428 = vld [vmem:[%s420 + $0x38] sm:$0xff]
      %v429 = vld [vmem:[%s420 + $0x40] sm:$0xff]
      %v431 = vsel %vm270, %v419, 0
      %433 = vmatprep.subr.mxu0 0.0
      %434 = vmatpush1.msra.mxu0 0.0
      %435 = vmatprep.subr.mxu0 0.0
      %436 = vmatpush1.msra.mxu0 0.0
      %437 = vmatprep.subr.mxu0 0.0
      %438 = vmatpush1.msra.mxu0 0.0
      %439 = vmatprep.subr.mxu0 0.0
      %440 = vmatpush1.msra.mxu0 0.0
      %441 = vmatprep.subr.mxu0 0.0
      %442 = vmatpush1.msra.mxu0 0.0
      %443 = vmatprep.subr.mxu0 0.0
      %444 = vmatpush1.msra.mxu0 0.0
      %445 = vmatprep.subr.mxu0 0.0
      %446 = vmatpush1.msra.mxu0 0.0
      %447 = vmatprep.subr.mxu0 0.0
      %448 = vmatpush1.msra.mxu0 %v429
      %449 = vmatprep.subr.mxu0 0.0
      %450 = vmatpush1.msra.mxu0 %v428
      %451 = vmatprep.subr.mxu0 0.0
      %452 = vmatpush1.msra.mxu0 %v427
      %453 = vmatprep.subr.mxu0 0.0
      %454 = vmatpush1.msra.mxu0 %v426
      %455 = vmatprep.subr.mxu0 0.0
      %456 = vmatpush1.msra.mxu0 %v425
      %457 = vmatprep.subr.mxu0 0.0
      %458 = vmatpush1.msra.mxu0 %v424
      %459 = vmatprep.subr.mxu0 0.0
      %460 = vmatpush1.msra.mxu0 %v423
      %461 = vmatprep.subr.mxu0 0.0
      %462 = vmatpush1.msra.mxu0 %v422
      %463 = vmatprep.subr.mxu0 0.0
      %464 = vmatpush1.msra.mxu0 %v421
      %465 = vmatprep.subr.mxu0 0.0
      %466 = vmatpush2.msra.mxu0 0.0
      %467 = vmatprep.subr.mxu0 0.0
      %468 = vmatpush2.msra.mxu0 0.0
      %469 = vmatprep.subr.mxu0 0.0
      %470 = vmatpush2.msra.mxu0 0.0
      %471 = vmatprep.subr.mxu0 0.0
      %472 = vmatpush2.msra.mxu0 0.0
      %473 = vmatprep.subr.mxu0 0.0
      %474 = vmatpush2.msra.mxu0 0.0
      %475 = vmatprep.subr.mxu0 0.0
      %476 = vmatpush2.msra.mxu0 0.0
      %477 = vmatprep.subr.mxu0 0.0
      %478 = vmatpush2.msra.mxu0 0.0
      %479 = vmatprep.subr.mxu0 0.0
      %480 = vmatpush2.msra.mxu0 0.0
      %481 = vmatprep.subr.mxu0 0.0
      %482 = vmatpush2.msra.mxu0 0.0
      %483 = vmatprep.subr.mxu0 0.0
      %484 = vmatpush2.msra.mxu0 0.0
      %485 = vmatprep.subr.mxu0 0.0
      %486 = vmatpush2.msra.mxu0 0.0
      %487 = vmatprep.subr.mxu0 0.0
      %488 = vmatpush2.msra.mxu0 0.0
      %489 = vmatprep.subr.mxu0 0.0
      %490 = vmatpush2.msra.mxu0 0.0
      %491 = vmatprep.subr.mxu0 0.0
      %492 = vmatpush2.msra.mxu0 0.0
      %493 = vmatprep.subr.mxu0 0.0
      %494 = vmatpush2.msra.mxu0 0.0
      %495 = vmatprep.subr.mxu0 0.0
      %496 = vmatpush2.msra.mxu0 0.0
      %497 = vmatprep.mubr.f32.mxu0 0.0
      %498 = vmatmul.mubr.f32.gmra.mxu0 %v431
      %v499 = vpop.f32.mrf.mxu0
      %v500 = vadd.f32 0.0, %v499
      %v501 = vpop.f32.mrf.mxu0
      %502 = vdwg.mxu0
      %v503 = vadd.f32 %v414, %v500
      %v504 = vld [vmem:[%s2] sm:$0x3]
      %v505 = vld [vmem:[%s2 + $0x2] sm:$0x3]
      %v506 = vld [vmem:[%s2 + $0x4] sm:$0x3]
      %v507 = vld [vmem:[%s2 + $0x6] sm:$0x3]
      %vm508 = vcmask 58368
      %v509 = vsel %vm508, %v504, 0.0
      %v510 = vsel %vm508, %v505, 0.0
      %v511 = vadd.f32 %v509, %v510
      %v512 = vsel %vm508, %v506, 0.0
      %v513 = vadd.f32 %v511, %v512
      %v514 = vsel %vm508, %v507, 0.0
      %v515 = vadd.f32 %v513, %v514
      %v516 = vmul.f32 %v515, 0.001953125
      %v517 = vmul.f32 %v516, %v516
      %v519 = vrot.slane %v517, 7
      %v521 = vsub.f32 %v516, %v519
      %v522 = vld [vmem:[%s3] sm:$0x1]
      %v523 = vadd.f32 %v521, 1e-05
      %v524 = vrsqrt.pop %v523
      %v527 = vunpack.c.l.s4 1966171168
      %v528 = vunpack.c.0.s8 %v527
      %v529 = vlaneseq
      %v530 = vshrl.u32 %v529, 7
      %v531 = vsub.s32 %v528, %v530
      %v532 = vrot.slane %v524, %v531
      %v533 = vcombine.high %v532, %v532
      %v535 = vunpack.c.l.s4 1966171168
      %v536 = vunpack.c.0.s8 %v535
      %v537 = vlaneseq
      %v538 = vshrl.u32 %v537, 7
      %v539 = vsub.s32 %v536, %v538
      %v540 = vrot.slane %v533, %v539
      %v542 = vmul.f32 %v522, %v540
      %v543 = vld [vmem:[%s4] sm:$0x1]
      %v544 = vmul.f32 %v516, %v542
      %v545 = vsub.f32 %v543, %v544
      %v547 = vlaneseq
      %v548 = vshrl.u32 %v547, 7
      %v549 = vsub.s32 0, %v548
      %v550 = vrot.slane %v542, %v549
      %551 = vrot.lane.b32.xlu0 %v550, 8
      %v552 = vpop.permute.xlu0 %551
      %554 = vrot.lane.b32.xlu0 %v550, 16
      %v555 = vpop.permute.xlu0 %554
      %557 = vrot.lane.b32.xlu0 %v550, 24
      %v558 = vpop.permute.xlu0 %557
      %560 = vrot.lane.b32.xlu0 %v550, 32
      %v561 = vpop.permute.xlu0 %560
      %563 = vrot.lane.b32.xlu0 %v550, 40
      %v564 = vpop.permute.xlu0 %563
      %566 = vrot.lane.b32.xlu0 %v550, 48
      %v567 = vpop.permute.xlu0 %566
      %569 = vrot.lane.b32.xlu0 %v550, 56
      %v570 = vpop.permute.xlu0 %569
      %572 = vrot.lane.b32.xlu0 %v550, 64
      %v573 = vpop.permute.xlu0 %572
      %575 = vrot.lane.b32.xlu0 %v550, 72
      %v576 = vpop.permute.xlu0 %575
      %578 = vrot.lane.b32.xlu0 %v550, 80
      %v579 = vpop.permute.xlu0 %578
      %581 = vrot.lane.b32.xlu0 %v550, 88
      %v582 = vpop.permute.xlu0 %581
      %584 = vrot.lane.b32.xlu0 %v550, 96
      %v585 = vpop.permute.xlu0 %584
      %587 = vrot.lane.b32.xlu0 %v550, 104
      %v588 = vpop.permute.xlu0 %587
      %590 = vrot.lane.b32.xlu0 %v550, 112
      %v591 = vpop.permute.xlu0 %590
      %593 = vrot.lane.b32.xlu0 %v550, 120
      %v594 = vpop.permute.xlu0 %593
      %vm596 = vcmask 64512
      %v597 = vsel %vm596, %v542, %v552
      %vm598 = vcmask 130048
      %v599 = vsel %vm598, %v597, %v555
      %vm600 = vcmask 195584
      %v601 = vsel %vm600, %v599, %v558
      %vm602 = vcmask 261120
      %v603 = vsel %vm602, %v601, %v561
      %vm604 = vcmask 326656
      %v605 = vsel %vm604, %v603, %v564
      %vm606 = vcmask 392192
      %v607 = vsel %vm606, %v605, %v567
      %vm608 = vcmask 457728
      %v609 = vsel %vm608, %v607, %v570
      %vm610 = vcmask 523264
      %v611 = vsel %vm610, %v609, %v573
      %v612 = vsel %vm270, %v611, %v576
      %vm613 = vcmask 654336
      %v614 = vsel %vm613, %v612, %v579
      %vm615 = vcmask 719872
      %v616 = vsel %vm615, %v614, %v582
      %vm617 = vcmask 785408
      %v618 = vsel %vm617, %v616, %v585
      %vm619 = vcmask 850944
      %v620 = vsel %vm619, %v618, %v588
      %vm621 = vcmask 916480
      %v622 = vsel %vm621, %v620, %v591
      %vm623 = vcmask 982016
      %v624 = vsel %vm623, %v622, %v594
      %v626 = vlaneseq
      %v627 = vshrl.u32 %v626, 7
      %v628 = vsub.s32 0, %v627
      %v629 = vrot.slane %v545, %v628
      %630 = vrot.lane.b32.xlu0 %v629, 8
      %v631 = vpop.permute.xlu0 %630
      %633 = vrot.lane.b32.xlu0 %v629, 16
      %v634 = vpop.permute.xlu0 %633
      %636 = vrot.lane.b32.xlu0 %v629, 24
      %v637 = vpop.permute.xlu0 %636
      %639 = vrot.lane.b32.xlu0 %v629, 32
      %v640 = vpop.permute.xlu0 %639
      %642 = vrot.lane.b32.xlu0 %v629, 40
      %v643 = vpop.permute.xlu0 %642
      %645 = vrot.lane.b32.xlu0 %v629, 48
      %v646 = vpop.permute.xlu0 %645
      %648 = vrot.lane.b32.xlu0 %v629, 56
      %v649 = vpop.permute.xlu0 %648
      %651 = vrot.lane.b32.xlu0 %v629, 64
      %v652 = vpop.permute.xlu0 %651
      %654 = vrot.lane.b32.xlu0 %v629, 72
      %v655 = vpop.permute.xlu0 %654
      %657 = vrot.lane.b32.xlu0 %v629, 80
      %v658 = vpop.permute.xlu0 %657
      %660 = vrot.lane.b32.xlu0 %v629, 88
      %v661 = vpop.permute.xlu0 %660
      %663 = vrot.lane.b32.xlu0 %v629, 96
      %v664 = vpop.permute.xlu0 %663
      %666 = vrot.lane.b32.xlu0 %v629, 104
      %v667 = vpop.permute.xlu0 %666
      %669 = vrot.lane.b32.xlu0 %v629, 112
      %v670 = vpop.permute.xlu0 %669
      %672 = vrot.lane.b32.xlu0 %v629, 120
      %v673 = vpop.permute.xlu0 %672
      %v675 = vsel %vm596, %v545, %v631
      %v676 = vsel %vm598, %v675, %v634
      %v677 = vsel %vm600, %v676, %v637
      %v678 = vsel %vm602, %v677, %v640
      %v679 = vsel %vm604, %v678, %v643
      %v680 = vsel %vm606, %v679, %v646
      %v681 = vsel %vm608, %v680, %v649
      %v682 = vsel %vm610, %v681, %v652
      %v683 = vsel %vm270, %v682, %v655
      %v684 = vsel %vm613, %v683, %v658
      %v685 = vsel %vm615, %v684, %v661
      %v686 = vsel %vm617, %v685, %v664
      %v687 = vsel %vm619, %v686, %v667
      %v688 = vsel %vm621, %v687, %v670
      %v689 = vsel %vm623, %v688, %v673
      %v690 = vlaneseq
      %v691 = vshrl.u32 %v690, 7
      %v692 = vsub.s32 0, %v691
      %v693 = vrot.slane %v624, %v692
      %v694 = vmul.f32 %v503, %v693
      %v695 = vlaneseq
      %v696 = vshrl.u32 %v695, 7
      %v697 = vsub.s32 0, %v696
      %v698 = vrot.slane %v689, %v697
      %v699 = vadd.f32 %v694, %v698
      %v700 = vmax.f32 %v699, 0.0
      %701 = vst [vmem:[%s244] sm:$0xff] %v700
      %p702 = scmp.lt.s32.totalorder %s20, 1
      %s703 = scalar_select %p702, %s20, 1
      %p704 = scmp.lt.s32.totalorder %s21, 1
      %s705 = scalar_select %p704, %s21, 1
      %s706 = smul.addr %s703, 2
      %s707 = sadd.s32 %s705, %s706
      %s708 = smul.addr %s707, 8
      %s709 = scalar_lea.vmem %s5, %s708
      // Predicated region
      $region41: #{conv_bn_relu.3} parent=39 // pred_check
        %p710 = pneg %p158
      $region42: #{conv_bn_relu.3} parent=39 // pred_check_branch
        %712 = sbr.rel (%p710) target = $region44
      $region43: #{conv_bn_relu.3} parent=39 // pred_region
        _
      $region44: #{conv_bn_relu.3} parent=39 // pred_fallthru
        _
    $region40: #{conv_bn_relu.3} parent=5 // pred_fallthru
      _
    %p713 = scmp.le.s32.totalorder 2, %s11
    // Predicated region
    $region45: #{conv_bn_relu.3} parent=5 // pred_check
      %p714 = pneg %p713
    $region46: #{conv_bn_relu.3} parent=5 // pred_check_branch
      %716 = sbr.rel (%p714) target = $region48
    $region47: #{conv_bn_relu.3} parent=5 // pred_region
      %s717 = ssub.s32 %s11, 2
      // Predicated region
      $region49: #{conv_bn_relu.3} parent=47 // pred_check
        %p718 = pneg %p164
      $region50: #{conv_bn_relu.3} parent=47 // pred_check_branch
        %720 = sbr.rel (%p718) target = $region52
      $region51: #{conv_bn_relu.3} parent=47 // pred_region
        %p721 = scmp.lt.s32.totalorder %s22, 1
        %s722 = scalar_select %p721, %s22, 1
        %p723 = scmp.lt.s32.totalorder %s23, 1
        %s724 = scalar_select %p723, %s23, 1
        %s725 = smul.addr %s722, 2
        %s726 = sadd.s32 %s724, %s725
        %s727 = smul.addr %s726, 8
        %s728 = scalar_lea.vmem %s5, %s727
      $region52: #{conv_bn_relu.3} parent=47 // pred_fallthru
        _
    $region48: #{conv_bn_relu.3} parent=5 // pred_fallthru
      _
  $region6: #{conv_bn_relu.3} parent=0 // loop_footer
    %s15 = sadd.s32 1, %s11
  $region7: #{conv_bn_relu.3} parent=0 // loop_footer_branch
    %10 = sbr.rel target = $region3
  $region8: #{conv_bn_relu.3} parent=0 // loop_exit
    _

</llo_original>
